<compile_context>
chip_gen: v5e
topology: v5e:2x2
jax: 0.10.0
libtpu: 0.0.40
codegen_flags: <defaults>
</compile_context>

<pallas_src>
import functools

import jax
import jax.numpy as jnp
from jax import lax
from jax.experimental import pallas as pl
from jax.experimental.pallas import tpu as pltpu

NUM_CLASSES = 9
EPS = 1e-8
CLAMP_MIN = 0.01
_PACK = 128  # original rows packed per lane-dense row


def _cdiv(a, b):
    return (a + b - 1) // b


def _round_up(a, b):
    return _cdiv(a, b) * b


def _f1_partials_kernel(x_ref, oh_ref, lane_row_ref, sel_ref, out_ref,
                        tp_acc, ps_acc, ts_acc, *, n_true):
    core = pl.program_id(0)          # "parallel" axis (TensorCore split on v7x)
    step = pl.program_id(1)          # "arbitrary" batch-reduction axis
    steps = pl.num_programs(1)
    tr, lanes = x_ref.shape          # (packed rows per tile, 128 * NUM_CLASSES)
    c = sel_ref.shape[1]

    @pl.when(step == 0)
    def _():
        tp_acc[...] = jnp.zeros_like(tp_acc)
        ps_acc[...] = jnp.zeros_like(ps_acc)
        ts_acc[...] = jnp.zeros_like(ts_acc)

    x = x_ref[...]                              # (tr, lanes) f32 packed logits
    oh = oh_ref[...].astype(jnp.float32)        # (tr, lanes) packed one-hot

    # Validity mask: original-row index of each (sublane, lane) element.
    blk = core * steps + step                   # global tile index
    sub = lax.broadcasted_iota(jnp.int32, (tr, lanes), 0)
    row = (blk * tr + sub) * _PACK + lane_row_ref[...]   # (tr, lanes)
    valid = (row < n_true).astype(jnp.float32)

    # sigmoid(x) == 0.5 * tanh(x / 2) + 0.5  -> single EUP op (vs exp + recip).
    p = 0.5 * jnp.tanh(0.5 * x) + 0.5
    # clamp(p*(1-onehot), min=0.01) + p*onehot  (faithful to the PyTorch module,
    # including the +0.01 added to the target-class probability).
    p_eff = jnp.maximum(p * (1.0 - oh), CLAMP_MIN) + p * oh
    p_eff = p_eff * valid
    oh = oh * valid

    # Per-class partial sums via the (idle) MXU: (tr, lanes) @ (lanes, 9).
    sel = sel_ref[...]
    tp_acc[...] += jnp.dot(p_eff * oh, sel, preferred_element_type=jnp.float32)
    ps_acc[...] += jnp.dot(p_eff, sel, preferred_element_type=jnp.float32)
    ts_acc[...] += jnp.dot(oh, sel, preferred_element_type=jnp.float32)

    @pl.when(step == steps - 1)
    def _():
        # Deferred cross-sublane collapse, once per core.
        out_ref[:, 0:1, :] = jnp.sum(tp_acc[...], axis=0, keepdims=True).reshape(1, 1, c)
        out_ref[:, 1:2, :] = jnp.sum(ps_acc[...], axis=0, keepdims=True).reshape(1, 1, c)
        out_ref[:, 2:3, :] = jnp.sum(ts_acc[...], axis=0, keepdims=True).reshape(1, 1, c)


def _f1_loss_impl(predict, targets, *, tm=8192, num_core_splits=2):
    """predict: (n, 9) float logits; targets: (n,) int labels in [0, 9)."""
    n, c = predict.shape
    assert c == NUM_CLASSES
    lanes = _PACK * c                       # 1152, lane-aligned
    nc = max(1, int(num_core_splits))

    # Packed rows per tile (one packed row = 128 original rows).  Multiple of 32 so
    # the int8 one-hot block satisfies the (32, 128) 8-bit sublane tiling.
    tr = max(32, (int(tm) // (_PACK * 32)) * 32)
    n_pr = _cdiv(n, _PACK)                  # packed rows actually needed
    tr = min(tr, _round_up(_cdiv(n_pr, nc), 32))
    steps = _cdiv(n_pr, nc * tr)
    n_pr_pad = nc * steps * tr
    n_pad = n_pr_pad * _PACK

    # ---- wrapper-side data prep (all free reshapes / cheap elementwise) ----
    predict = predict.astype(jnp.float32)
    onehot = (targets.reshape(n, 1).astype(jnp.int32)
              == jnp.arange(c, dtype=jnp.int32)[None, :]).astype(jnp.int8)
    pad = n_pad - n
    if pad:
        predict = jnp.pad(predict, ((0, pad), (0, 0)))
        onehot = jnp.pad(onehot, ((0, pad), (0, 0)))        # padded rows -> all-zero
    x_packed = predict.reshape(n_pr_pad, lanes)              # lane-dense
    oh_packed = onehot.reshape(n_pr_pad, lanes)
    # lane -> original-row offset within a packed row (j // 9), tiny constant input
    lane_row = (jnp.arange(lanes, dtype=jnp.int32) // c).reshape(1, lanes)
    # (1152, 9) 0/1 selector: S[j, k] = (j % 9 == k)
    sel = (jnp.arange(lanes, dtype=jnp.int32)[:, None] % c
           == jnp.arange(c, dtype=jnp.int32)[None, :]).astype(jnp.float32)

    kernel = functools.partial(_f1_partials_kernel, n_true=n)

    partials = pl.pallas_call(
        kernel,
        out_shape=jax.ShapeDtypeStruct((nc, 3, c), jnp.float32),
        grid_spec=pltpu.PrefetchScalarGridSpec(
            num_scalar_prefetch=0,
            grid=(nc, steps),
            in_specs=[
                pl.BlockSpec((tr, lanes), lambda cc, s: (cc * steps + s, 0)),
                pl.BlockSpec((tr, lanes), lambda cc, s: (cc * steps + s, 0)),
                pl.BlockSpec((1, lanes), lambda cc, s: (0, 0)),
                pl.BlockSpec((lanes, c), lambda cc, s: (0, 0)),
            ],
            out_specs=pl.BlockSpec((1, 3, c), lambda cc, s: (cc, 0, 0)),
            scratch_shapes=[
                pltpu.VMEM((tr, c), jnp.float32),   # tp partials (per sublane)
                pltpu.VMEM((tr, c), jnp.float32),   # sum(p_eff) partials
                pltpu.VMEM((tr, c), jnp.float32),   # sum(onehot) partials
            ],
        ),
        compiler_params=pltpu.CompilerParams(
            dimension_semantics=("parallel", "arbitrary"),
        ),
        cost_estimate=pl.CostEstimate(
            flops=int(12 * n_pad * c + 6 * n_pad * c * c),
            transcendentals=int(n_pad * c),
            bytes_accessed=int(n_pad * c * 5 + lanes * 4 * (1 + c) + nc * 3 * c * 4),
        ),
    )(x_packed, oh_packed, lane_row, sel)

    # Tiny epilogue: combine per-core partials and finish precision / recall / F1.
    tp = jnp.sum(partials[:, 0, :], axis=0)
    ps = jnp.sum(partials[:, 1, :], axis=0)
    ts = jnp.sum(partials[:, 2, :], axis=0)
    precision = tp / (ps + EPS)
    recall = tp / (ts + EPS)
    f1 = 2.0 * (precision * recall / (precision + recall + EPS))
    return 1.0 - jnp.mean(f1)


f1_loss = jax.jit(_f1_loss_impl, static_argnames=("tm", "num_core_splits"))


def _f1_loss_ref(predict, targets):
    """Pure-JAX reference mirroring the PyTorch forward."""
    onehot = jax.nn.one_hot(targets, NUM_CLASSES, dtype=jnp.float32)
    p = jax.nn.sigmoid(predict.astype(jnp.float32))
    p_eff = jnp.maximum(p * (1.0 - onehot), CLAMP_MIN) + p * onehot
    tp = jnp.sum(p_eff * onehot, axis=0)
    precision = tp / (jnp.sum(p_eff, axis=0) + EPS)
    recall = tp / (jnp.sum(onehot, axis=0) + EPS)
    f1 = 2.0 * (precision * recall / (precision + recall + EPS))
    return 1.0 - jnp.mean(f1)


if __name__ == "__main__":
    key = jax.random.PRNGKey(0)
    k_pred, k_tgt, k_pred2, k_tgt2 = jax.random.split(key, 4)

    # Small case: batch=14 (exercises padding mask + the 2-way core-split combine).
    batch = 14
    predict = jax.random.normal(k_pred, (batch, NUM_CLASSES), dtype=jnp.float32)
    targets = jax.random.randint(k_tgt, (batch,), 0, NUM_CLASSES, dtype=jnp.int32)
    loss = jax.block_until_ready(f1_loss(predict, targets))
    ref = jax.block_until_ready(_f1_loss_ref(predict, targets))
    assert jnp.allclose(loss, ref, atol=1e-5, rtol=1e-5), (loss, ref)

    # Larger case with a smaller tile: exercises multi-step accumulation per core.
    batch2 = 20000
    predict2 = jax.random.normal(k_pred2, (batch2, NUM_CLASSES), dtype=jnp.float32)
    targets2 = jax.random.randint(k_tgt2, (batch2,), 0, NUM_CLASSES, dtype=jnp.int32)
    loss2 = jax.block_until_ready(f1_loss(predict2, targets2, tm=4096))
    ref2 = jax.block_until_ready(_f1_loss_ref(predict2, targets2))
    assert jnp.allclose(loss2, ref2, atol=1e-4, rtol=1e-4), (loss2, ref2)

    print("KERNEL_OK")
</pallas_src>

<mosaic_0001>
module attributes {stable_mosaic.version = 11 : i64} {
  func.func @_f1_partials_kernel(%arg0: i32, %arg1: i32, %arg2: memref<32x1152xf32, #tpu.memory_space<vmem>>, %arg3: memref<32x1152xi8, #tpu.memory_space<vmem>>, %arg4: memref<1x1152xi32, #tpu.memory_space<vmem>>, %arg5: memref<1152x9xf32, #tpu.memory_space<vmem>>, %arg6: memref<1x3x9xf32, #tpu.memory_space<vmem>>, %arg7: memref<32x9xf32, #tpu.memory_space<vmem>>, %arg8: memref<32x9xf32, #tpu.memory_space<vmem>>, %arg9: memref<32x9xf32, #tpu.memory_space<vmem>>) attributes {dimension_semantics = [#tpu.dimension_semantics<parallel>, #tpu.dimension_semantics<arbitrary>], iteration_bounds = array<i64: 2, 1>, scalar_prefetch = 0 : i64, scratch_operands = 3 : i64, tpu.core_type = #tpu.core_type<tc>, window_params = [{transform_indices = @transform_0, window_bounds = array<i64: 32, 1152>}, {transform_indices = @transform_1, window_bounds = array<i64: 32, 1152>}, {pipeline_mode = #tpu.pipeline_mode<synchronous>, transform_indices = @transform_2, window_bounds = array<i64: 1, 1152>}, {pipeline_mode = #tpu.pipeline_mode<synchronous>, transform_indices = @transform_3, window_bounds = array<i64: 1152, 9>}, {transform_indices = @transform_4, window_bounds = array<i64: 1, 3, 9>}]} {
    %c0_i32 = arith.constant 0 : i32
    %0 = arith.cmpi eq, %arg1, %c0_i32 : i32
    %1 = arith.extui %0 : i1 to i32
    %c0_i32_0 = arith.constant 0 : i32
    %2 = arith.cmpi ne, %1, %c0_i32_0 : i32
    scf.if %2 {
      %cst_29 = arith.constant 0.000000e+00 : f32
      %54 = vector.broadcast %cst_29 : f32 to vector<32x9xf32>
      %c0_30 = arith.constant 0 : index
      %c0_31 = arith.constant 0 : index
      %55 = vector.load %arg7[%c0_30, %c0_31] : memref<32x9xf32, #tpu.memory_space<vmem>>, vector<32x9xf32>
      tpu.vector_store %arg7[%c0_30, %c0_31], %54 {strides = array<i32>} : memref<32x9xf32, #tpu.memory_space<vmem>>, vector<32x9xf32>,
      %cst_32 = arith.constant 0.000000e+00 : f32
      %56 = vector.broadcast %cst_32 : f32 to vector<32x9xf32>
      %c0_33 = arith.constant 0 : index
      %c0_34 = arith.constant 0 : index
      %57 = vector.load %arg8[%c0_33, %c0_34] : memref<32x9xf32, #tpu.memory_space<vmem>>, vector<32x9xf32>
      tpu.vector_store %arg8[%c0_33, %c0_34], %56 {strides = array<i32>} : memref<32x9xf32, #tpu.memory_space<vmem>>, vector<32x9xf32>,
      %cst_35 = arith.constant 0.000000e+00 : f32
      %58 = vector.broadcast %cst_35 : f32 to vector<32x9xf32>
      %c0_36 = arith.constant 0 : index
      %c0_37 = arith.constant 0 : index
      %59 = vector.load %arg9[%c0_36, %c0_37] : memref<32x9xf32, #tpu.memory_space<vmem>>, vector<32x9xf32>
      tpu.vector_store %arg9[%c0_36, %c0_37], %58 {strides = array<i32>} : memref<32x9xf32, #tpu.memory_space<vmem>>, vector<32x9xf32>,
    } else {
    }
    %c0 = arith.constant 0 : index
    %c0_1 = arith.constant 0 : index
    %3 = vector.load %arg2[%c0, %c0_1] : memref<32x1152xf32, #tpu.memory_space<vmem>>, vector<32x1152xf32>
    %c0_2 = arith.constant 0 : index
    %c0_3 = arith.constant 0 : index
    %4 = vector.load %arg3[%c0_2, %c0_3] : memref<32x1152xi8, #tpu.memory_space<vmem>>, vector<32x1152xi8>
    %5 = arith.sitofp %4 : vector<32x1152xi8> to vector<32x1152xf32>
    %c1_i32 = arith.constant 1 : i32
    %6 = arith.muli %arg0, %c1_i32 : i32
    %7 = arith.addi %6, %arg1 : i32
    %8 = tpu.iota {dimensions = array<i32: 0>} : vector<32x1152xi32>
    %c32_i32 = arith.constant 32 : i32
    %9 = arith.muli %7, %c32_i32 : i32
    %10 = vector.broadcast %9 : i32 to vector<32x1152xi32>
    %11 = arith.addi %10, %8 : vector<32x1152xi32>
    %c128_i32 = arith.constant 128 : i32
    %12 = vector.broadcast %c128_i32 : i32 to vector<32x1152xi32>
    %13 = arith.muli %11, %12 : vector<32x1152xi32>
    %c0_4 = arith.constant 0 : index
    %c0_5 = arith.constant 0 : index
    %14 = vector.load %arg4[%c0_4, %c0_5] : memref<1x1152xi32, #tpu.memory_space<vmem>>, vector<1x1152xi32>
    %15 = vector.broadcast %14 : vector<1x1152xi32> to vector<32x1152xi32>
    %16 = arith.addi %13, %15 : vector<32x1152xi32>
    %c14_i32 = arith.constant 14 : i32
    %17 = vector.broadcast %c14_i32 : i32 to vector<32x1152xi32>
    %18 = arith.cmpi slt, %16, %17 : vector<32x1152xi32>
    %19 = arith.extui %18 : vector<32x1152xi1> to vector<32x1152xi32>
    %20 = arith.sitofp %19 : vector<32x1152xi32> to vector<32x1152xf32>
    %cst = arith.constant 5.000000e-01 : f32
    %21 = vector.broadcast %cst : f32 to vector<32x1152xf32>
    %22 = arith.mulf %21, %3 : vector<32x1152xf32>
    %23 = math.tanh %22 : vector<32x1152xf32>
    %cst_6 = arith.constant 5.000000e-01 : f32
    %24 = vector.broadcast %cst_6 : f32 to vector<32x1152xf32>
    %25 = arith.mulf %24, %23 : vector<32x1152xf32>
    %cst_7 = arith.constant 5.000000e-01 : f32
    %26 = vector.broadcast %cst_7 : f32 to vector<32x1152xf32>
    %27 = arith.addf %25, %26 : vector<32x1152xf32>
    %cst_8 = arith.constant 1.000000e+00 : f32
    %28 = vector.broadcast %cst_8 : f32 to vector<32x1152xf32>
    %29 = arith.subf %28, %5 : vector<32x1152xf32>
    %30 = arith.mulf %27, %29 : vector<32x1152xf32>
    %cst_9 = arith.constant 0.00999999977 : f32
    %31 = vector.broadcast %cst_9 : f32 to vector<32x1152xf32>
    %32 = arith.maximumf %30, %31 : vector<32x1152xf32>
    %33 = arith.mulf %27, %5 : vector<32x1152xf32>
    %34 = arith.addf %32, %33 : vector<32x1152xf32>
    %35 = arith.mulf %34, %20 : vector<32x1152xf32>
    %36 = arith.mulf %5, %20 : vector<32x1152xf32>
    %c0_10 = arith.constant 0 : index
    %c0_11 = arith.constant 0 : index
    %37 = vector.load %arg5[%c0_10, %c0_11] : memref<1152x9xf32, #tpu.memory_space<vmem>>, vector<1152x9xf32>
    %c0_12 = arith.constant 0 : index
    %c0_13 = arith.constant 0 : index
    %38 = vector.load %arg7[%c0_12, %c0_13] : memref<32x9xf32, #tpu.memory_space<vmem>>, vector<32x9xf32>
    %39 = arith.mulf %35, %36 : vector<32x1152xf32>
    %cst_14 = arith.constant dense<0.000000e+00> : vector<32x9xf32>
    %40 = tpu.matmul %39, %37, %cst_14 {dimension_numbers = #tpu.dot_dimension_numbers<[1], [0], [0], [1], [0, 0, 1, 1], [], []>} : vector<32x1152xf32>, vector<1152x9xf32>, vector<32x9xf32> -> vector<32x9xf32>
    %41 = arith.addf %38, %40 : vector<32x9xf32>
    %c0_15 = arith.constant 0 : index
    %c0_16 = arith.constant 0 : index
    %42 = vector.load %arg7[%c0_15, %c0_16] : memref<32x9xf32, #tpu.memory_space<vmem>>, vector<32x9xf32>
    tpu.vector_store %arg7[%c0_15, %c0_16], %41 {strides = array<i32>} : memref<32x9xf32, #tpu.memory_space<vmem>>, vector<32x9xf32>,
    %c0_17 = arith.constant 0 : index
    %c0_18 = arith.constant 0 : index
    %43 = vector.load %arg8[%c0_17, %c0_18] : memref<32x9xf32, #tpu.memory_space<vmem>>, vector<32x9xf32>
    %cst_19 = arith.constant dense<0.000000e+00> : vector<32x9xf32>
    %44 = tpu.matmul %35, %37, %cst_19 {dimension_numbers = #tpu.dot_dimension_numbers<[1], [0], [0], [1], [0, 0, 1, 1], [], []>} : vector<32x1152xf32>, vector<1152x9xf32>, vector<32x9xf32> -> vector<32x9xf32>
    %45 = arith.addf %43, %44 : vector<32x9xf32>
    %c0_20 = arith.constant 0 : index
    %c0_21 = arith.constant 0 : index
    %46 = vector.load %arg8[%c0_20, %c0_21] : memref<32x9xf32, #tpu.memory_space<vmem>>, vector<32x9xf32>
    tpu.vector_store %arg8[%c0_20, %c0_21], %45 {strides = array<i32>} : memref<32x9xf32, #tpu.memory_space<vmem>>, vector<32x9xf32>,
    %c0_22 = arith.constant 0 : index
    %c0_23 = arith.constant 0 : index
    %47 = vector.load %arg9[%c0_22, %c0_23] : memref<32x9xf32, #tpu.memory_space<vmem>>, vector<32x9xf32>
    %cst_24 = arith.constant dense<0.000000e+00> : vector<32x9xf32>
    %48 = tpu.matmul %36, %37, %cst_24 {dimension_numbers = #tpu.dot_dimension_numbers<[1], [0], [0], [1], [0, 0, 1, 1], [], []>} : vector<32x1152xf32>, vector<1152x9xf32>, vector<32x9xf32> -> vector<32x9xf32>
    %49 = arith.addf %47, %48 : vector<32x9xf32>
    %c0_25 = arith.constant 0 : index
    %c0_26 = arith.constant 0 : index
    %50 = vector.load %arg9[%c0_25, %c0_26] : memref<32x9xf32, #tpu.memory_space<vmem>>, vector<32x9xf32>
    tpu.vector_store %arg9[%c0_25, %c0_26], %49 {strides = array<i32>} : memref<32x9xf32, #tpu.memory_space<vmem>>, vector<32x9xf32>,
    %c0_i32_27 = arith.constant 0 : i32
    %51 = arith.cmpi eq, %arg1, %c0_i32_27 : i32
    %52 = arith.extui %51 : i1 to i32
    %c0_i32_28 = arith.constant 0 : i32
    %53 = arith.cmpi ne, %52, %c0_i32_28 : i32
    scf.if %53 {
      %c0_29 = arith.constant 0 : index
      %c0_30 = arith.constant 0 : index
      %54 = vector.load %arg7[%c0_29, %c0_30] : memref<32x9xf32, #tpu.memory_space<vmem>>, vector<32x9xf32>
      %cst_31 = arith.constant dense<0.000000e+00> : vector<9xf32>
      %55 = vector.multi_reduction <add>, %54, %cst_31 [0] : vector<32x9xf32> to vector<9xf32>
      %56 = vector.shape_cast %55 : vector<9xf32> to vector<1x9xf32>
      %57 = vector.shape_cast %56 : vector<1x9xf32> to vector<1x1x9xf32>
      %c0_32 = arith.constant 0 : index
      %c0_33 = arith.constant 0 : index
      %c0_34 = arith.constant 0 : index
      %58 = vector.load %arg6[%c0_32, %c0_33, %c0_34] : memref<1x3x9xf32, #tpu.memory_space<vmem>>, vector<1x1x9xf32>
      tpu.vector_store %arg6[%c0_32, %c0_33, %c0_34], %57 {strides = array<i32>} : memref<1x3x9xf32, #tpu.memory_space<vmem>>, vector<1x1x9xf32>,
      %c0_35 = arith.constant 0 : index
      %c0_36 = arith.constant 0 : index
      %59 = vector.load %arg8[%c0_35, %c0_36] : memref<32x9xf32, #tpu.memory_space<vmem>>, vector<32x9xf32>
      %cst_37 = arith.constant dense<0.000000e+00> : vector<9xf32>
      %60 = vector.multi_reduction <add>, %59, %cst_37 [0] : vector<32x9xf32> to vector<9xf32>
      %61 = vector.shape_cast %60 : vector<9xf32> to vector<1x9xf32>
      %62 = vector.shape_cast %61 : vector<1x9xf32> to vector<1x1x9xf32>
      %c0_38 = arith.constant 0 : index
      %c1 = arith.constant 1 : index
      %c0_39 = arith.constant 0 : index
      %63 = vector.load %arg6[%c0_38, %c1, %c0_39] : memref<1x3x9xf32, #tpu.memory_space<vmem>>, vector<1x1x9xf32>
      tpu.vector_store %arg6[%c0_38, %c1, %c0_39], %62 {strides = array<i32>} : memref<1x3x9xf32, #tpu.memory_space<vmem>>, vector<1x1x9xf32>,
      %c0_40 = arith.constant 0 : index
      %c0_41 = arith.constant 0 : index
      %64 = vector.load %arg9[%c0_40, %c0_41] : memref<32x9xf32, #tpu.memory_space<vmem>>, vector<32x9xf32>
      %cst_42 = arith.constant dense<0.000000e+00> : vector<9xf32>
      %65 = vector.multi_reduction <add>, %64, %cst_42 [0] : vector<32x9xf32> to vector<9xf32>
      %66 = vector.shape_cast %65 : vector<9xf32> to vector<1x9xf32>
      %67 = vector.shape_cast %66 : vector<1x9xf32> to vector<1x1x9xf32>
      %c0_43 = arith.constant 0 : index
      %c2 = arith.constant 2 : index
      %c0_44 = arith.constant 0 : index
      %68 = vector.load %arg6[%c0_43, %c2, %c0_44] : memref<1x3x9xf32, #tpu.memory_space<vmem>>, vector<1x1x9xf32>
      tpu.vector_store %arg6[%c0_43, %c2, %c0_44], %67 {strides = array<i32>} : memref<1x3x9xf32, #tpu.memory_space<vmem>>, vector<1x1x9xf32>,
    } else {
    }
    return
  }
  func.func @transform_0(%arg0: i32, %arg1: i32) -> (i32, i32) {
    %c1_i32 = arith.constant 1 : i32
    %0 = arith.muli %arg0, %c1_i32 : i32
    %1 = arith.addi %0, %arg1 : i32
    %c0_i32 = arith.constant 0 : i32
    %c0_i32_0 = arith.constant 0 : i32
    return %1, %c0_i32 : i32, i32
  }
  func.func @transform_1(%arg0: i32, %arg1: i32) -> (i32, i32) {
    %c1_i32 = arith.constant 1 : i32
    %0 = arith.muli %arg0, %c1_i32 : i32
    %1 = arith.addi %0, %arg1 : i32
    %c0_i32 = arith.constant 0 : i32
    %c0_i32_0 = arith.constant 0 : i32
    return %1, %c0_i32 : i32, i32
  }
  func.func @transform_2(%arg0: i32, %arg1: i32) -> (i32, i32) {
    %c0_i32 = arith.constant 0 : i32
    %c0_i32_0 = arith.constant 0 : i32
    %c0_i32_1 = arith.constant 0 : i32
    return %c0_i32, %c0_i32_0 : i32, i32
  }
  func.func @transform_3(%arg0: i32, %arg1: i32) -> (i32, i32) {
    %c0_i32 = arith.constant 0 : i32
    %c0_i32_0 = arith.constant 0 : i32
    %c0_i32_1 = arith.constant 0 : i32
    return %c0_i32, %c0_i32_0 : i32, i32
  }
  func.func @transform_4(%arg0: i32, %arg1: i32) -> (i32, i32, i32) {
    %c0_i32 = arith.constant 0 : i32
    %c0_i32_0 = arith.constant 0 : i32
    %c0_i32_1 = arith.constant 0 : i32
    return %arg0, %c0_i32, %c0_i32_0 : i32, i32, i32
  }
}

</mosaic_0001>

<llo_original>
// kernel: _f1_loss_impl.1
$region0: #{_f1_loss_impl.1}
  #allocation0 [shape = 'u32[]', space=smem, size = 0x4, offset = 0x4, fixed_abs, tag = 'smem constant byte address 0x4 - core index']
  #allocation1 [shape = 'u32[72,128]{1,0:T(1,128)}', space=vmem, size = 0x9000, scoped, tag = 'internal scratch']
  #allocation2 [shape = 'f32[32,9]{1,0:T(8,128)}', space=vmem, size = 0x4000, scoped, tag = 'scratch operand']
  #allocation3 [shape = 'f32[32,9]{1,0:T(8,128)}', space=vmem, size = 0x4000, scoped, tag = 'scratch operand']
  #allocation4 [shape = 'f32[32,9]{1,0:T(8,128)}', space=vmem, size = 0x4000, scoped, tag = 'scratch operand']
  %s0 = inlined_call_operand.vmem [shape: f32[64,1152], index: 0, kind: input, shape index: {}]
  %s1 = inlined_call_operand.vmem [shape: s8[64,1152], index: 1, kind: input, shape index: {}]
  %s2 = inlined_call_operand.vmem [shape: s32[1,1152], index: 2, kind: input, shape index: {}]
  %s3 = inlined_call_operand.vmem [shape: f32[1152,9], index: 3, kind: input, shape index: {}]
  %s4 = inlined_call_operand.vmem [shape: f32[2,3,9], index: 4, kind: output, shape index: {}]
  %s5 = sld [smem:[#allocation0]]
  $region57: #{_f1_loss_impl.1} parent=0
    _
  %s7 = ssub.s32 1, %s5
  %s8 = scalar_select 0, %s7, %s5
  loop: start=0, step=1, limit=4
  $region2: #{_f1_loss_impl.1} parent=0 // loop_pre_header
    _
  $region3: #{_f1_loss_impl.1} parent=0 // loop_header
    %s10 = sphi 0, %s14
    %p11 = scmp.ge.s32.totalorder %s10, 4
    %s17 = sphi 0, %s29
    %s18 = sphi 0, %s25
    %s19 = sphi 0, %s17
    %s20 = sphi 0, %s18
    %s21 = sphi 0, %s19
    %s22 = sphi 0, %s20
    %s34 = sphi 0, %s36
    %s37 = sphi 0, %s34
    %s38 = sphi 0, %s37
    %s54 = sphi 0, %s38
    %s62 = sphi 0, %s64
    %s65 = sphi 0, %s62
    %s66 = sphi 0, %s65
    %s82 = sphi 0, %s66
    %s86 = sphi 0, %s86
    %s88 = sphi 0, %s86
    %s89 = sphi 0, %s88
    %s103 = sphi 0, %s89
    %s107 = sphi 0, %s107
    %s109 = sphi 0, %s107
    %s110 = sphi 0, %s109
    %s124 = sphi 0, %s110
    %s130 = sphi 0, %s132
    %s133 = sphi 0, %s130
    %s134 = sphi 0, %s133
    %s150 = sphi 0, %s134
  $region4: #{_f1_loss_impl.1} parent=0 // loop_header_branch
    %13 = sbr.rel (%p11) target = $region8
  $region5: #{_f1_loss_impl.1} parent=0 // loop_body
    %s15 = ssub.s32 %s10, 1
    %s16 = ssub.s32 %s10, 2
    %s23 = sadd.s32 1, %s18
    %p24 = scmp.ge.s32.totalorder %s23, 1
    %s25 = scalar_select %p24, 0, %s23
    %s26 = sadd.s32 1, %s17
    %s27 = scalar_select %p24, %s26, %s17
    %p28 = scmp.ge.s32.totalorder %s27, 2
    %s29 = scalar_select %p28, 0, %s27
    %s30 = sadd.s32 %s17, %s18
    %s31 = sadd.s32 %s29, %s25
    %s32 = ssub.s32 %s30, %s31
    %p33 = scmp.eq.s32.totalorder %s32, 0
    %s35 = sadd.s32 %s34, 1
    %s36 = scalar_select %p33, %s34, %s35
    %p39 = pneg %p33
    %p40 = scmp.eq.s32.totalorder %s10, 1
    %p41 = por %p39, %p40
    %p42 = scmp.ne.s32.totalorder %s34, %s37
    %p43 = scmp.eq.s32.totalorder %s10, 0
    %p44 = por %p42, %p43
    %p45 = scmp.ne.s32.totalorder %s34, %s37
    %p46 = scmp.eq.s32.totalorder %s15, 1
    %p47 = por %p45, %p46
    %p48 = scmp.ne.s32.totalorder %s37, %s38
    %p49 = scmp.eq.s32.totalorder %s15, 0
    %p50 = por %p48, %p49
    %p51 = scmp.ne.s32.totalorder %s37, %s38
    %p52 = scmp.eq.s32.totalorder %s16, 1
    %p53 = por %p51, %p52
    %p55 = scmp.ne.s32.totalorder %s38, %s54
    %p56 = scmp.eq.s32.totalorder %s16, 0
    %p57 = por %p55, %p56
    %s58 = sadd.s32 %s17, %s18
    %s59 = sadd.s32 %s29, %s25
    %s60 = ssub.s32 %s58, %s59
    %p61 = scmp.eq.s32.totalorder %s60, 0
    %s63 = sadd.s32 %s62, 1
    %s64 = scalar_select %p61, %s62, %s63
    %p67 = pneg %p61
    %p68 = scmp.eq.s32.totalorder %s10, 1
    %p69 = por %p67, %p68
    %p70 = scmp.ne.s32.totalorder %s62, %s65
    %p71 = scmp.eq.s32.totalorder %s10, 0
    %p72 = por %p70, %p71
    %p73 = scmp.ne.s32.totalorder %s62, %s65
    %p74 = scmp.eq.s32.totalorder %s15, 1
    %p75 = por %p73, %p74
    %p76 = scmp.ne.s32.totalorder %s65, %s66
    %p77 = scmp.eq.s32.totalorder %s15, 0
    %p78 = por %p76, %p77
    %p79 = scmp.ne.s32.totalorder %s65, %s66
    %p80 = scmp.eq.s32.totalorder %s16, 1
    %p81 = por %p79, %p80
    %p83 = scmp.ne.s32.totalorder %s66, %s82
    %p84 = scmp.eq.s32.totalorder %s16, 0
    %p85 = por %p83, %p84
    %s87 = sadd.s32 %s86, 1
    %p90 = scmp.eq.s32.totalorder %s10, 1
    %p91 = scmp.ne.s32.totalorder %s86, %s88
    %p92 = scmp.eq.s32.totalorder %s10, 0
    %p93 = por %p91, %p92
    %p94 = scmp.ne.s32.totalorder %s86, %s88
    %p95 = scmp.eq.s32.totalorder %s15, 1
    %p96 = por %p94, %p95
    %p97 = scmp.ne.s32.totalorder %s88, %s89
    %p98 = scmp.eq.s32.totalorder %s15, 0
    %p99 = por %p97, %p98
    %p100 = scmp.ne.s32.totalorder %s88, %s89
    %p101 = scmp.eq.s32.totalorder %s16, 1
    %p102 = por %p100, %p101
    %p104 = scmp.ne.s32.totalorder %s89, %s103
    %p105 = scmp.eq.s32.totalorder %s16, 0
    %p106 = por %p104, %p105
    %s108 = sadd.s32 %s107, 1
    %p111 = scmp.eq.s32.totalorder %s10, 1
    %p112 = scmp.ne.s32.totalorder %s107, %s109
    %p113 = scmp.eq.s32.totalorder %s10, 0
    %p114 = por %p112, %p113
    %p115 = scmp.ne.s32.totalorder %s107, %s109
    %p116 = scmp.eq.s32.totalorder %s15, 1
    %p117 = por %p115, %p116
    %p118 = scmp.ne.s32.totalorder %s109, %s110
    %p119 = scmp.eq.s32.totalorder %s15, 0
    %p120 = por %p118, %p119
    %p121 = scmp.ne.s32.totalorder %s109, %s110
    %p122 = scmp.eq.s32.totalorder %s16, 1
    %p123 = por %p121, %p122
    %p125 = scmp.ne.s32.totalorder %s110, %s124
    %p126 = scmp.eq.s32.totalorder %s16, 0
    %p127 = por %p125, %p126
    %s128 = ssub.s32 %s17, %s29
    %p129 = scmp.eq.s32.totalorder %s128, 0
    %s131 = sadd.s32 %s130, 1
    %s132 = scalar_select %p129, %s130, %s131
    %p135 = pneg %p129
    %p136 = scmp.eq.s32.totalorder %s10, 1
    %p137 = por %p135, %p136
    %p138 = scmp.ne.s32.totalorder %s130, %s133
    %p139 = scmp.eq.s32.totalorder %s10, 0
    %p140 = por %p138, %p139
    %p141 = scmp.ne.s32.totalorder %s130, %s133
    %p142 = scmp.eq.s32.totalorder %s15, 1
    %p143 = por %p141, %p142
    %p144 = scmp.ne.s32.totalorder %s133, %s134
    %p145 = scmp.eq.s32.totalorder %s15, 0
    %p146 = por %p144, %p145
    %p147 = scmp.ne.s32.totalorder %s133, %s134
    %p148 = scmp.eq.s32.totalorder %s16, 1
    %p149 = por %p147, %p148
    %p151 = scmp.ne.s32.totalorder %s134, %s150
    %p152 = scmp.eq.s32.totalorder %s16, 0
    %p153 = por %p151, %p152
    %p154 = scmp.le.s32.totalorder 1, %s10
    %p155 = scmp.lt.s32.totalorder %s10, 3
    %p156 = pnand %p154, %p155
    %p157 = pneg %p156
    // Predicated region
    $region9: #{_f1_loss_impl.1} parent=5 // pred_check
      _
    $region10: #{_f1_loss_impl.1} parent=5 // pred_check_branch
      %159 = sbr.rel (%p156) target = $region12
    $region11: #{_f1_loss_impl.1} parent=5 // pred_region
      %s160 = ssub.s32 %s10, 1
      // Predicated region
      $region13: #{_f1_loss_impl.1} parent=11 // pred_check
        %p161 = pneg %p99
      $region14: #{_f1_loss_impl.1} parent=11 // pred_check_branch
        %163 = sbr.rel (%p161) target = $region16
      $region15: #{_f1_loss_impl.1} parent=11 // pred_region
        _
      $region16: #{_f1_loss_impl.1} parent=11 // pred_fallthru
        _
      // Predicated region
      $region17: #{_f1_loss_impl.1} parent=11 // pred_check
        %p164 = pneg %p120
      $region18: #{_f1_loss_impl.1} parent=11 // pred_check_branch
        %166 = sbr.rel (%p164) target = $region20
      $region19: #{_f1_loss_impl.1} parent=11 // pred_region
        _
      $region20: #{_f1_loss_impl.1} parent=11 // pred_fallthru
        _
    $region12: #{_f1_loss_impl.1} parent=5 // pred_fallthru
      _
    %p167 = scmp.lt.s32.totalorder %s10, 2
    // Predicated region
    $region21: #{_f1_loss_impl.1} parent=5 // pred_check
      %p168 = pneg %p167
    $region22: #{_f1_loss_impl.1} parent=5 // pred_check_branch
      %170 = sbr.rel (%p168) target = $region24
    $region23: #{_f1_loss_impl.1} parent=5 // pred_region
      // Predicated region
      $region25: #{_f1_loss_impl.1} parent=23 // pred_check
        %p171 = pneg %p44
      $region26: #{_f1_loss_impl.1} parent=23 // pred_check_branch
        %173 = sbr.rel (%p171) target = $region28
      $region27: #{_f1_loss_impl.1} parent=23 // pred_region
        %s174 = sadd.s32 %s17, %s18
        %s175 = smul.u32 4, %s174
        %p176 = scmp.lt.s32.totalorder %s175, 7
        %s177 = scalar_select %p176, %s175, 7
        %s178 = smul.addr %s177, 9
        %s179 = smul.addr %s178, 8
        %s180 = scalar_lea.vmem %s0, %s179
        %s181 = sadd.s32 %s17, %s18
        %s182 = smul.u32 4, %s181
      $region28: #{_f1_loss_impl.1} parent=23 // pred_fallthru
        _
      // Predicated region
      $region29: #{_f1_loss_impl.1} parent=23 // pred_check
        %p183 = pneg %p72
      $region30: #{_f1_loss_impl.1} parent=23 // pred_check_branch
        %185 = sbr.rel (%p183) target = $region32
      $region31: #{_f1_loss_impl.1} parent=23 // pred_region
        %s186 = sadd.s32 %s17, %s18
        %p187 = scmp.lt.s32.totalorder %s186, 1
        %s188 = scalar_select %p187, %s186, 1
        %s189 = smul.addr %s188, 9
        %s190 = smul.addr %s189, 8
        %s191 = scalar_lea.vmem %s1, %s190
        %s192 = sadd.s32 %s17, %s18
      $region32: #{_f1_loss_impl.1} parent=23 // pred_fallthru
        _
    $region24: #{_f1_loss_impl.1} parent=5 // pred_fallthru
      _
    %p193 = scmp.le.s32.totalorder 1, %s10
    %p194 = scmp.lt.s32.totalorder %s10, 3
    %p195 = pnand %p193, %p194
    %p196 = pneg %p195
    // Predicated region
    $region33: #{_f1_loss_impl.1} parent=5 // pred_check
      _
    $region34: #{_f1_loss_impl.1} parent=5 // pred_check_branch
      %198 = sbr.rel (%p195) target = $region36
    $region35: #{_f1_loss_impl.1} parent=5 // pred_region
      %s199 = ssub.s32 %s10, 1
      %s200 = sadd.s32 %s19, %s20
      %s201 = smul.u32 4, %s200
      %p202 = scmp.lt.s32.totalorder %s201, 7
      %s203 = scalar_select %p202, %s201, 7
      %s204 = smul.addr %s203, 9
      %s205 = smul.addr %s204, 8
      %s206 = scalar_lea.vmem %s0, %s205
      %p207 = pneg %p50
      %p208 = pneg %p47
      %s209 = sadd.s32 %s19, %s20
      %p210 = scmp.lt.s32.totalorder %s209, 1
      %s211 = scalar_select %p210, %s209, 1
      %s212 = smul.addr %s211, 9
      %s213 = smul.addr %s212, 8
      %s214 = scalar_lea.vmem %s1, %s213
      %p215 = pneg %p78
      %p216 = pneg %p75
      %p217 = pneg %p99
      %p218 = pneg %p96
      %p219 = pneg %p120
      %p220 = pneg %p117
      %p221 = pneg %p146
      %p222 = pneg %p143
      %p223 = scmp.lt.s32.totalorder %s19, 1
      %s224 = scalar_select %p223, %s19, 1
      %s225 = smul.addr %s224, 4
      %s226 = scalar_lea.vmem %s4, %s225
      %s227 = sadd.s32 %s19, %s20
      %s228 = smul.u32 4, %s227
      %p229 = scmp.lt.s32.totalorder %s228, 7
      %s230 = scalar_select %p229, %s228, 7
      %s231 = smul.addr %s230, 9
      %s232 = smul.addr %s231, 8
      %s233 = scalar_lea.vmem %s0, %s232
      %s234 = sadd.s32 %s19, %s20
      %s235 = smul.u32 4, %s234
      %s236 = sadd.s32 %s19, %s20
      %p237 = scmp.lt.s32.totalorder %s236, 1
      %s238 = scalar_select %p237, %s236, 1
      %s239 = smul.addr %s238, 9
      %s240 = smul.addr %s239, 8
      %s241 = scalar_lea.vmem %s1, %s240
      %s242 = sadd.s32 %s19, %s20
      %p243 = scmp.lt.s32.totalorder %s19, 1
      %s244 = scalar_select %p243, %s19, 1
      %s245 = smul.addr %s244, 4
      %s246 = scalar_lea.vmem %s4, %s245
      %p247 = scmp.eq.s32.totalorder %s20, 0
      // Predicated region
      $region37: #{_f1_loss_impl.1} parent=35 // pred_check
        %p248 = pneg %p247
      $region38: #{_f1_loss_impl.1} parent=35 // pred_check_branch
        %250 = sbr.rel (%p248) target = $region40
      $region39: #{_f1_loss_impl.1} parent=35 // pred_region
        %vm251 = vcmask 72704
        %252 = vst.msk [vmem:[#allocation2] sm:$0xff] %vm251, 0.0
        %253 = vst.msk [vmem:[#allocation2 + $0x8] sm:$0xff] %vm251, 0.0
        %254 = vst.msk [vmem:[#allocation2 + $0x10] sm:$0xff] %vm251, 0.0
        %255 = vst.msk [vmem:[#allocation2 + $0x18] sm:$0xff] %vm251, 0.0
        %256 = vst.msk [vmem:[#allocation3] sm:$0xff] %vm251, 0.0
        %257 = vst.msk [vmem:[#allocation3 + $0x8] sm:$0xff] %vm251, 0.0
        %258 = vst.msk [vmem:[#allocation3 + $0x10] sm:$0xff] %vm251, 0.0
        %259 = vst.msk [vmem:[#allocation3 + $0x18] sm:$0xff] %vm251, 0.0
        %260 = vst.msk [vmem:[#allocation4] sm:$0xff] %vm251, 0.0
        %261 = vst.msk [vmem:[#allocation4 + $0x8] sm:$0xff] %vm251, 0.0
        %262 = vst.msk [vmem:[#allocation4 + $0x10] sm:$0xff] %vm251, 0.0
        %263 = vst.msk [vmem:[#allocation4 + $0x18] sm:$0xff] %vm251, 0.0
      $region40: #{_f1_loss_impl.1} parent=35 // pred_fallthru
        _
      %v264 = vld [vmem:[%s233] sm:$0xff]
      %v265 = vld [vmem:[%s233 + $0x8] sm:$0xff]
      %v266 = vld [vmem:[%s233 + $0x10] sm:$0xff]
      %v267 = vld [vmem:[%s233 + $0x18] sm:$0xff]
      %v268 = vld [vmem:[%s233 + $0x20] sm:$0xff]
      %v269 = vld [vmem:[%s233 + $0x28] sm:$0xff]
      %v270 = vld [vmem:[%s233 + $0x30] sm:$0xff]
      %v271 = vld [vmem:[%s233 + $0x38] sm:$0xff]
      %v272 = vld [vmem:[%s233 + $0x40] sm:$0xff]
      %v273 = vld [vmem:[%s233 + $0x48] sm:$0xff]
      %v274 = vld [vmem:[%s233 + $0x50] sm:$0xff]
      %v275 = vld [vmem:[%s233 + $0x58] sm:$0xff]
      %v276 = vld [vmem:[%s233 + $0x60] sm:$0xff]
      %v277 = vld [vmem:[%s233 + $0x68] sm:$0xff]
      %v278 = vld [vmem:[%s233 + $0x70] sm:$0xff]
      %v279 = vld [vmem:[%s233 + $0x78] sm:$0xff]
      %v280 = vld [vmem:[%s233 + $0x80] sm:$0xff]
      %v281 = vld [vmem:[%s233 + $0x88] sm:$0xff]
      %v282 = vld [vmem:[%s233 + $0x90] sm:$0xff]
      %v283 = vld [vmem:[%s233 + $0x98] sm:$0xff]
      %v284 = vld [vmem:[%s233 + $0xa0] sm:$0xff]
      %v285 = vld [vmem:[%s233 + $0xa8] sm:$0xff]
      %v286 = vld [vmem:[%s233 + $0xb0] sm:$0xff]
      %v287 = vld [vmem:[%s233 + $0xb8] sm:$0xff]
      %v288 = vld [vmem:[%s233 + $0xc0] sm:$0xff]
      %v289 = vld [vmem:[%s233 + $0xc8] sm:$0xff]
      %v290 = vld [vmem:[%s233 + $0xd0] sm:$0xff]
      %v291 = vld [vmem:[%s233 + $0xd8] sm:$0xff]
      %v292 = vld [vmem:[%s233 + $0xe0] sm:$0xff]
      %v293 = vld [vmem:[%s233 + $0xe8] sm:$0xff]
      %v294 = vld [vmem:[%s233 + $0xf0] sm:$0xff]
      %v295 = vld [vmem:[%s233 + $0xf8] sm:$0xff]
      %v296 = vld [vmem:[%s233 + $0x100] sm:$0xff]
      %v297 = vld [vmem:[%s233 + $0x108] sm:$0xff]
      %v298 = vld [vmem:[%s233 + $0x110] sm:$0xff]
      %v299 = vld [vmem:[%s233 + $0x118] sm:$0xff]
      %v300 = vld [vmem:[%s241] sm:$0xff]
      %v301 = vld [vmem:[%s241 + $0x8] sm:$0xff]
      %v302 = vld [vmem:[%s241 + $0x10] sm:$0xff]
      %v303 = vld [vmem:[%s241 + $0x18] sm:$0xff]
      %v304 = vld [vmem:[%s241 + $0x20] sm:$0xff]
      %v305 = vld [vmem:[%s241 + $0x28] sm:$0xff]
      %v306 = vld [vmem:[%s241 + $0x30] sm:$0xff]
      %v307 = vld [vmem:[%s241 + $0x38] sm:$0xff]
      %v308 = vld [vmem:[%s241 + $0x40] sm:$0xff]
      %v309 = vunpack.c.0.s8 %v300
      %v310 = vunpack.c.0.s8 %v301
      %v311 = vunpack.c.0.s8 %v302
      %v312 = vunpack.c.0.s8 %v303
      %v313 = vunpack.c.0.s8 %v304
      %v314 = vunpack.c.0.s8 %v305
      %v315 = vunpack.c.0.s8 %v306
      %v316 = vunpack.c.0.s8 %v307
      %v317 = vunpack.c.0.s8 %v308
      %v318 = vunpack.c.1.s8 %v300
      %v319 = vunpack.c.1.s8 %v301
      %v320 = vunpack.c.1.s8 %v302
      %v321 = vunpack.c.1.s8 %v303
      %v322 = vunpack.c.1.s8 %v304
      %v323 = vunpack.c.1.s8 %v305
      %v324 = vunpack.c.1.s8 %v306
      %v325 = vunpack.c.1.s8 %v307
      %v326 = vunpack.c.1.s8 %v308
      %v327 = vunpack.c.2.s8 %v300
      %v328 = vunpack.c.2.s8 %v301
      %v329 = vunpack.c.2.s8 %v302
      %v330 = vunpack.c.2.s8 %v303
      %v331 = vunpack.c.2.s8 %v304
      %v332 = vunpack.c.2.s8 %v305
      %v333 = vunpack.c.2.s8 %v306
      %v334 = vunpack.c.2.s8 %v307
      %v335 = vunpack.c.2.s8 %v308
      %v336 = vunpack.c.3.s8 %v300
      %v337 = vunpack.c.3.s8 %v301
      %v338 = vunpack.c.3.s8 %v302
      %v339 = vunpack.c.3.s8 %v303
      %v340 = vunpack.c.3.s8 %v304
      %v341 = vunpack.c.3.s8 %v305
      %v342 = vunpack.c.3.s8 %v306
      %v343 = vunpack.c.3.s8 %v307
      %v344 = vunpack.c.3.s8 %v308
      %v345 = vcvt.s32.f32 %v309
      %v346 = vcvt.s32.f32 %v310
      %v347 = vcvt.s32.f32 %v311
      %v348 = vcvt.s32.f32 %v312
      %v349 = vcvt.s32.f32 %v313
      %v350 = vcvt.s32.f32 %v314
      %v351 = vcvt.s32.f32 %v315
      %v352 = vcvt.s32.f32 %v316
      %v353 = vcvt.s32.f32 %v317
      %v354 = vcvt.s32.f32 %v318
      %v355 = vcvt.s32.f32 %v319
      %v356 = vcvt.s32.f32 %v320
      %v357 = vcvt.s32.f32 %v321
      %v358 = vcvt.s32.f32 %v322
      %v359 = vcvt.s32.f32 %v323
      %v360 = vcvt.s32.f32 %v324
      %v361 = vcvt.s32.f32 %v325
      %v362 = vcvt.s32.f32 %v326
      %v363 = vcvt.s32.f32 %v327
      %v364 = vcvt.s32.f32 %v328
      %v365 = vcvt.s32.f32 %v329
      %v366 = vcvt.s32.f32 %v330
      %v367 = vcvt.s32.f32 %v331
      %v368 = vcvt.s32.f32 %v332
      %v369 = vcvt.s32.f32 %v333
      %v370 = vcvt.s32.f32 %v334
      %v371 = vcvt.s32.f32 %v335
      %v372 = vcvt.s32.f32 %v336
      %v373 = vcvt.s32.f32 %v337
      %v374 = vcvt.s32.f32 %v338
      %v375 = vcvt.s32.f32 %v339
      %v376 = vcvt.s32.f32 %v340
      %v377 = vcvt.s32.f32 %v341
      %v378 = vcvt.s32.f32 %v342
      %v379 = vcvt.s32.f32 %v343
      %v380 = vcvt.s32.f32 %v344
      %s381 = sadd.s32 %s19, %s20
      %v382 = vlaneseq
      %v383 = vshrl.u32 %v382, 7
      %v384 = vadd.s32 %v383, 8
      %v385 = vadd.s32 %v383, 16
      %v386 = vadd.s32 %v383, 24
      %s387 = smul.u32 %s381, 32
      %v388 = vstv %s387
      %v389 = vadd.s32 %v388, %v383
      %v390 = vadd.s32 %v388, %v384
      %v391 = vadd.s32 %v388, %v385
      %v392 = vadd.s32 %v388, %v386
      %v393 = vmul.u32 %v389, 128
      %v394 = vmul.u32 %v390, 128
      %v395 = vmul.u32 %v391, 128
      %v396 = vmul.u32 %v392, 128
      %v397 = vld [vmem:[%s2] sm:$0xff]
      %v398 = vld [vmem:[%s2 + $0x8] sm:$0x1]
      %v399 = vperm.slane %v397, 0
      %v400 = vperm.slane %v397, 1
      %v401 = vperm.slane %v397, 2
      %v402 = vperm.slane %v397, 3
      %v403 = vperm.slane %v397, 4
      %v404 = vperm.slane %v397, 5
      %v405 = vperm.slane %v397, 6
      %v406 = vperm.slane %v397, 7
      %v407 = vperm.slane %v398, 0
      %v408 = vadd.s32 %v393, %v399
      %v409 = vadd.s32 %v393, %v400
      %v410 = vadd.s32 %v393, %v401
      %v411 = vadd.s32 %v393, %v402
      %v412 = vadd.s32 %v393, %v403
      %v413 = vadd.s32 %v393, %v404
      %v414 = vadd.s32 %v393, %v405
      %v415 = vadd.s32 %v393, %v406
      %v416 = vadd.s32 %v393, %v407
      %v417 = vadd.s32 %v394, %v399
      %v418 = vadd.s32 %v394, %v400
      %v419 = vadd.s32 %v394, %v401
      %v420 = vadd.s32 %v394, %v402
      %v421 = vadd.s32 %v394, %v403
      %v422 = vadd.s32 %v394, %v404
      %v423 = vadd.s32 %v394, %v405
      %v424 = vadd.s32 %v394, %v406
      %v425 = vadd.s32 %v394, %v407
      %v426 = vadd.s32 %v395, %v399
      %v427 = vadd.s32 %v395, %v400
      %v428 = vadd.s32 %v395, %v401
      %v429 = vadd.s32 %v395, %v402
      %v430 = vadd.s32 %v395, %v403
      %v431 = vadd.s32 %v395, %v404
      %v432 = vadd.s32 %v395, %v405
      %v433 = vadd.s32 %v395, %v406
      %v434 = vadd.s32 %v395, %v407
      %v435 = vadd.s32 %v396, %v399
      %v436 = vadd.s32 %v396, %v400
      %v437 = vadd.s32 %v396, %v401
      %v438 = vadd.s32 %v396, %v402
      %v439 = vadd.s32 %v396, %v403
      %v440 = vadd.s32 %v396, %v404
      %v441 = vadd.s32 %v396, %v405
      %v442 = vadd.s32 %v396, %v406
      %v443 = vadd.s32 %v396, %v407
      %vm444 = vcmp.lt.s32.totalorder %v408, 14
      %vm445 = vcmp.lt.s32.totalorder %v409, 14
      %vm446 = vcmp.lt.s32.totalorder %v410, 14
      %vm447 = vcmp.lt.s32.totalorder %v411, 14
      %vm448 = vcmp.lt.s32.totalorder %v412, 14
      %vm449 = vcmp.lt.s32.totalorder %v413, 14
      %vm450 = vcmp.lt.s32.totalorder %v414, 14
      %vm451 = vcmp.lt.s32.totalorder %v415, 14
      %vm452 = vcmp.lt.s32.totalorder %v416, 14
      %vm453 = vcmp.lt.s32.totalorder %v417, 14
      %vm454 = vcmp.lt.s32.totalorder %v418, 14
      %vm455 = vcmp.lt.s32.totalorder %v419, 14
      %vm456 = vcmp.lt.s32.totalorder %v420, 14
      %vm457 = vcmp.lt.s32.totalorder %v421, 14
      %vm458 = vcmp.lt.s32.totalorder %v422, 14
      %vm459 = vcmp.lt.s32.totalorder %v423, 14
      %vm460 = vcmp.lt.s32.totalorder %v424, 14
      %vm461 = vcmp.lt.s32.totalorder %v425, 14
      %vm462 = vcmp.lt.s32.totalorder %v426, 14
      %vm463 = vcmp.lt.s32.totalorder %v427, 14
      %vm464 = vcmp.lt.s32.totalorder %v428, 14
      %vm465 = vcmp.lt.s32.totalorder %v429, 14
      %vm466 = vcmp.lt.s32.totalorder %v430, 14
      %vm467 = vcmp.lt.s32.totalorder %v431, 14
      %vm468 = vcmp.lt.s32.totalorder %v432, 14
      %vm469 = vcmp.lt.s32.totalorder %v433, 14
      %vm470 = vcmp.lt.s32.totalorder %v434, 14
      %vm471 = vcmp.lt.s32.totalorder %v435, 14
      %vm472 = vcmp.lt.s32.totalorder %v436, 14
      %vm473 = vcmp.lt.s32.totalorder %v437, 14
      %vm474 = vcmp.lt.s32.totalorder %v438, 14
      %vm475 = vcmp.lt.s32.totalorder %v439, 14
      %vm476 = vcmp.lt.s32.totalorder %v440, 14
      %vm477 = vcmp.lt.s32.totalorder %v441, 14
      %vm478 = vcmp.lt.s32.totalorder %v442, 14
      %vm479 = vcmp.lt.s32.totalorder %v443, 14
      %v480 = vsel %vm444, 1, 0
      %v481 = vsel %vm445, 1, 0
      %v482 = vsel %vm446, 1, 0
      %v483 = vsel %vm447, 1, 0
      %v484 = vsel %vm448, 1, 0
      %v485 = vsel %vm449, 1, 0
      %v486 = vsel %vm450, 1, 0
      %v487 = vsel %vm451, 1, 0
      %v488 = vsel %vm452, 1, 0
      %v489 = vsel %vm453, 1, 0
      %v490 = vsel %vm454, 1, 0
      %v491 = vsel %vm455, 1, 0
      %v492 = vsel %vm456, 1, 0
      %v493 = vsel %vm457, 1, 0
      %v494 = vsel %vm458, 1, 0
      %v495 = vsel %vm459, 1, 0
      %v496 = vsel %vm460, 1, 0
      %v497 = vsel %vm461, 1, 0
      %v498 = vsel %vm462, 1, 0
      %v499 = vsel %vm463, 1, 0
      %v500 = vsel %vm464, 1, 0
      %v501 = vsel %vm465, 1, 0
      %v502 = vsel %vm466, 1, 0
      %v503 = vsel %vm467, 1, 0
      %v504 = vsel %vm468, 1, 0
      %v505 = vsel %vm469, 1, 0
      %v506 = vsel %vm470, 1, 0
      %v507 = vsel %vm471, 1, 0
      %v508 = vsel %vm472, 1, 0
      %v509 = vsel %vm473, 1, 0
      %v510 = vsel %vm474, 1, 0
      %v511 = vsel %vm475, 1, 0
      %v512 = vsel %vm476, 1, 0
      %v513 = vsel %vm477, 1, 0
      %v514 = vsel %vm478, 1, 0
      %v515 = vsel %vm479, 1, 0
      %v516 = vcvt.s32.f32 %v480
      %v517 = vcvt.s32.f32 %v481
      %v518 = vcvt.s32.f32 %v482
      %v519 = vcvt.s32.f32 %v483
      %v520 = vcvt.s32.f32 %v484
      %v521 = vcvt.s32.f32 %v485
      %v522 = vcvt.s32.f32 %v486
      %v523 = vcvt.s32.f32 %v487
      %v524 = vcvt.s32.f32 %v488
      %v525 = vcvt.s32.f32 %v489
      %v526 = vcvt.s32.f32 %v490
      %v527 = vcvt.s32.f32 %v491
      %v528 = vcvt.s32.f32 %v492
      %v529 = vcvt.s32.f32 %v493
      %v530 = vcvt.s32.f32 %v494
      %v531 = vcvt.s32.f32 %v495
      %v532 = vcvt.s32.f32 %v496
      %v533 = vcvt.s32.f32 %v497
      %v534 = vcvt.s32.f32 %v498
      %v535 = vcvt.s32.f32 %v499
      %v536 = vcvt.s32.f32 %v500
      %v537 = vcvt.s32.f32 %v501
      %v538 = vcvt.s32.f32 %v502
      %v539 = vcvt.s32.f32 %v503
      %v540 = vcvt.s32.f32 %v504
      %v541 = vcvt.s32.f32 %v505
      %v542 = vcvt.s32.f32 %v506
      %v543 = vcvt.s32.f32 %v507
      %v544 = vcvt.s32.f32 %v508
      %v545 = vcvt.s32.f32 %v509
      %v546 = vcvt.s32.f32 %v510
      %v547 = vcvt.s32.f32 %v511
      %v548 = vcvt.s32.f32 %v512
      %v549 = vcvt.s32.f32 %v513
      %v550 = vcvt.s32.f32 %v514
      %v551 = vcvt.s32.f32 %v515
      %v552 = vmul.f32 %v264, 0.5
      %v553 = vmul.f32 %v265, 0.5
      %v554 = vmul.f32 %v266, 0.5
      %v555 = vmul.f32 %v267, 0.5
      %v556 = vmul.f32 %v268, 0.5
      %v557 = vmul.f32 %v269, 0.5
      %v558 = vmul.f32 %v270, 0.5
      %v559 = vmul.f32 %v271, 0.5
      %v560 = vmul.f32 %v272, 0.5
      %v561 = vmul.f32 %v273, 0.5
      %v562 = vmul.f32 %v274, 0.5
      %v563 = vmul.f32 %v275, 0.5
      %v564 = vmul.f32 %v276, 0.5
      %v565 = vmul.f32 %v277, 0.5
      %v566 = vmul.f32 %v278, 0.5
      %v567 = vmul.f32 %v279, 0.5
      %v568 = vmul.f32 %v280, 0.5
      %v569 = vmul.f32 %v281, 0.5
      %v570 = vmul.f32 %v282, 0.5
      %v571 = vmul.f32 %v283, 0.5
      %v572 = vmul.f32 %v284, 0.5
      %v573 = vmul.f32 %v285, 0.5
      %v574 = vmul.f32 %v286, 0.5
      %v575 = vmul.f32 %v287, 0.5
      %v576 = vmul.f32 %v288, 0.5
      %v577 = vmul.f32 %v289, 0.5
      %v578 = vmul.f32 %v290, 0.5
      %v579 = vmul.f32 %v291, 0.5
      %v580 = vmul.f32 %v292, 0.5
      %v581 = vmul.f32 %v293, 0.5
      %v582 = vmul.f32 %v294, 0.5
      %v583 = vmul.f32 %v295, 0.5
      %v584 = vmul.f32 %v296, 0.5
      %v585 = vmul.f32 %v297, 0.5
      %v586 = vmul.f32 %v298, 0.5
      %v587 = vmul.f32 %v299, 0.5
      %v588 = vtanh.pop %v552
      %v589 = vtanh.pop %v553
      %v590 = vtanh.pop %v554
      %v591 = vtanh.pop %v555
      %v592 = vtanh.pop %v556
      %v593 = vtanh.pop %v557
      %v594 = vtanh.pop %v558
      %v595 = vtanh.pop %v559
      %v596 = vtanh.pop %v560
      %v597 = vtanh.pop %v561
      %v598 = vtanh.pop %v562
      %v599 = vtanh.pop %v563
      %v600 = vtanh.pop %v564
      %v601 = vtanh.pop %v565
      %v602 = vtanh.pop %v566
      %v603 = vtanh.pop %v567
      %v604 = vtanh.pop %v568
      %v605 = vtanh.pop %v569
      %v606 = vtanh.pop %v570
      %v607 = vtanh.pop %v571
      %v608 = vtanh.pop %v572
      %v609 = vtanh.pop %v573
      %v610 = vtanh.pop %v574
      %v611 = vtanh.pop %v575
      %v612 = vtanh.pop %v576
      %v613 = vtanh.pop %v577
      %v614 = vtanh.pop %v578
      %v615 = vtanh.pop %v579
      %v616 = vtanh.pop %v580
      %v617 = vtanh.pop %v581
      %v618 = vtanh.pop %v582
      %v619 = vtanh.pop %v583
      %v620 = vtanh.pop %v584
      %v621 = vtanh.pop %v585
      %v622 = vtanh.pop %v586
      %v623 = vtanh.pop %v587
      %v624 = vmul.f32 %v588, 0.5
      %v625 = vmul.f32 %v589, 0.5
      %v626 = vmul.f32 %v590, 0.5
      %v627 = vmul.f32 %v591, 0.5
      %v628 = vmul.f32 %v592, 0.5
      %v629 = vmul.f32 %v593, 0.5
      %v630 = vmul.f32 %v594, 0.5
      %v631 = vmul.f32 %v595, 0.5
      %v632 = vmul.f32 %v596, 0.5
      %v633 = vmul.f32 %v597, 0.5
      %v634 = vmul.f32 %v598, 0.5
      %v635 = vmul.f32 %v599, 0.5
      %v636 = vmul.f32 %v600, 0.5
      %v637 = vmul.f32 %v601, 0.5
      %v638 = vmul.f32 %v602, 0.5
      %v639 = vmul.f32 %v603, 0.5
      %v640 = vmul.f32 %v604, 0.5
      %v641 = vmul.f32 %v605, 0.5
      %v642 = vmul.f32 %v606, 0.5
      %v643 = vmul.f32 %v607, 0.5
      %v644 = vmul.f32 %v608, 0.5
      %v645 = vmul.f32 %v609, 0.5
      %v646 = vmul.f32 %v610, 0.5
      %v647 = vmul.f32 %v611, 0.5
      %v648 = vmul.f32 %v612, 0.5
      %v649 = vmul.f32 %v613, 0.5
      %v650 = vmul.f32 %v614, 0.5
      %v651 = vmul.f32 %v615, 0.5
      %v652 = vmul.f32 %v616, 0.5
      %v653 = vmul.f32 %v617, 0.5
      %v654 = vmul.f32 %v618, 0.5
      %v655 = vmul.f32 %v619, 0.5
      %v656 = vmul.f32 %v620, 0.5
      %v657 = vmul.f32 %v621, 0.5
      %v658 = vmul.f32 %v622, 0.5
      %v659 = vmul.f32 %v623, 0.5
      %v660 = vadd.f32 %v624, 0.5
      %v661 = vadd.f32 %v625, 0.5
      %v662 = vadd.f32 %v626, 0.5
      %v663 = vadd.f32 %v627, 0.5
      %v664 = vadd.f32 %v628, 0.5
      %v665 = vadd.f32 %v629, 0.5
      %v666 = vadd.f32 %v630, 0.5
      %v667 = vadd.f32 %v631, 0.5
      %v668 = vadd.f32 %v632, 0.5
      %v669 = vadd.f32 %v633, 0.5
      %v670 = vadd.f32 %v634, 0.5
      %v671 = vadd.f32 %v635, 0.5
      %v672 = vadd.f32 %v636, 0.5
      %v673 = vadd.f32 %v637, 0.5
      %v674 = vadd.f32 %v638, 0.5
      %v675 = vadd.f32 %v639, 0.5
      %v676 = vadd.f32 %v640, 0.5
      %v677 = vadd.f32 %v641, 0.5
      %v678 = vadd.f32 %v642, 0.5
      %v679 = vadd.f32 %v643, 0.5
      %v680 = vadd.f32 %v644, 0.5
      %v681 = vadd.f32 %v645, 0.5
      %v682 = vadd.f32 %v646, 0.5
      %v683 = vadd.f32 %v647, 0.5
      %v684 = vadd.f32 %v648, 0.5
      %v685 = vadd.f32 %v649, 0.5
      %v686 = vadd.f32 %v650, 0.5
      %v687 = vadd.f32 %v651, 0.5
      %v688 = vadd.f32 %v652, 0.5
      %v689 = vadd.f32 %v653, 0.5
      %v690 = vadd.f32 %v654, 0.5
      %v691 = vadd.f32 %v655, 0.5
      %v692 = vadd.f32 %v656, 0.5
      %v693 = vadd.f32 %v657, 0.5
      %v694 = vadd.f32 %v658, 0.5
      %v695 = vadd.f32 %v659, 0.5
      %v696 = vsub.f32 1.0, %v345
      %v697 = vsub.f32 1.0, %v346
      %v698 = vsub.f32 1.0, %v347
      %v699 = vsub.f32 1.0, %v348
      %v700 = vsub.f32 1.0, %v349
      %v701 = vsub.f32 1.0, %v350
      %v702 = vsub.f32 1.0, %v351
      %v703 = vsub.f32 1.0, %v352
      %v704 = vsub.f32 1.0, %v353
      %v705 = vsub.f32 1.0, %v354
      %v706 = vsub.f32 1.0, %v355
      %v707 = vsub.f32 1.0, %v356
      %v708 = vsub.f32 1.0, %v357
      %v709 = vsub.f32 1.0, %v358
      %v710 = vsub.f32 1.0, %v359
      %v711 = vsub.f32 1.0, %v360
      %v712 = vsub.f32 1.0, %v361
      %v713 = vsub.f32 1.0, %v362
      %v714 = vsub.f32 1.0, %v363
      %v715 = vsub.f32 1.0, %v364
      %v716 = vsub.f32 1.0, %v365
      %v717 = vsub.f32 1.0, %v366
      %v718 = vsub.f32 1.0, %v367
      %v719 = vsub.f32 1.0, %v368
      %v720 = vsub.f32 1.0, %v369
      %v721 = vsub.f32 1.0, %v370
      %v722 = vsub.f32 1.0, %v371
      %v723 = vsub.f32 1.0, %v372
      %v724 = vsub.f32 1.0, %v373
      %v725 = vsub.f32 1.0, %v374
      %v726 = vsub.f32 1.0, %v375
      %v727 = vsub.f32 1.0, %v376
      %v728 = vsub.f32 1.0, %v377
      %v729 = vsub.f32 1.0, %v378
      %v730 = vsub.f32 1.0, %v379
      %v731 = vsub.f32 1.0, %v380
      %v732 = vmul.f32 %v660, %v696
      %v733 = vmul.f32 %v661, %v697
      %v734 = vmul.f32 %v662, %v698
      %v735 = vmul.f32 %v663, %v699
      %v736 = vmul.f32 %v664, %v700
      %v737 = vmul.f32 %v665, %v701
      %v738 = vmul.f32 %v666, %v702
      %v739 = vmul.f32 %v667, %v703
      %v740 = vmul.f32 %v668, %v704
      %v741 = vmul.f32 %v669, %v705
      %v742 = vmul.f32 %v670, %v706
      %v743 = vmul.f32 %v671, %v707
      %v744 = vmul.f32 %v672, %v708
      %v745 = vmul.f32 %v673, %v709
      %v746 = vmul.f32 %v674, %v710
      %v747 = vmul.f32 %v675, %v711
      %v748 = vmul.f32 %v676, %v712
      %v749 = vmul.f32 %v677, %v713
      %v750 = vmul.f32 %v678, %v714
      %v751 = vmul.f32 %v679, %v715
      %v752 = vmul.f32 %v680, %v716
      %v753 = vmul.f32 %v681, %v717
      %v754 = vmul.f32 %v682, %v718
      %v755 = vmul.f32 %v683, %v719
      %v756 = vmul.f32 %v684, %v720
      %v757 = vmul.f32 %v685, %v721
      %v758 = vmul.f32 %v686, %v722
      %v759 = vmul.f32 %v687, %v723
      %v760 = vmul.f32 %v688, %v724
      %v761 = vmul.f32 %v689, %v725
      %v762 = vmul.f32 %v690, %v726
      %v763 = vmul.f32 %v691, %v727
      %v764 = vmul.f32 %v692, %v728
      %v765 = vmul.f32 %v693, %v729
      %v766 = vmul.f32 %v694, %v730
      %v767 = vmul.f32 %v695, %v731
      %v768 = vmax.f32 %v732, 0.01
      %v769 = vmax.f32 %v733, 0.01
      %v770 = vmax.f32 %v734, 0.01
      %v771 = vmax.f32 %v735, 0.01
      %v772 = vmax.f32 %v736, 0.01
      %v773 = vmax.f32 %v737, 0.01
      %v774 = vmax.f32 %v738, 0.01
      %v775 = vmax.f32 %v739, 0.01
      %v776 = vmax.f32 %v740, 0.01
      %v777 = vmax.f32 %v741, 0.01
      %v778 = vmax.f32 %v742, 0.01
      %v779 = vmax.f32 %v743, 0.01
      %v780 = vmax.f32 %v744, 0.01
      %v781 = vmax.f32 %v745, 0.01
      %v782 = vmax.f32 %v746, 0.01
      %v783 = vmax.f32 %v747, 0.01
      %v784 = vmax.f32 %v748, 0.01
      %v785 = vmax.f32 %v749, 0.01
      %v786 = vmax.f32 %v750, 0.01
      %v787 = vmax.f32 %v751, 0.01
      %v788 = vmax.f32 %v752, 0.01
      %v789 = vmax.f32 %v753, 0.01
      %v790 = vmax.f32 %v754, 0.01
      %v791 = vmax.f32 %v755, 0.01
      %v792 = vmax.f32 %v756, 0.01
      %v793 = vmax.f32 %v757, 0.01
      %v794 = vmax.f32 %v758, 0.01
      %v795 = vmax.f32 %v759, 0.01
      %v796 = vmax.f32 %v760, 0.01
      %v797 = vmax.f32 %v761, 0.01
      %v798 = vmax.f32 %v762, 0.01
      %v799 = vmax.f32 %v763, 0.01
      %v800 = vmax.f32 %v764, 0.01
      %v801 = vmax.f32 %v765, 0.01
      %v802 = vmax.f32 %v766, 0.01
      %v803 = vmax.f32 %v767, 0.01
      %v804 = vmul.f32 %v660, %v345
      %v805 = vmul.f32 %v661, %v346
      %v806 = vmul.f32 %v662, %v347
      %v807 = vmul.f32 %v663, %v348
      %v808 = vmul.f32 %v664, %v349
      %v809 = vmul.f32 %v665, %v350
      %v810 = vmul.f32 %v666, %v351
      %v811 = vmul.f32 %v667, %v352
      %v812 = vmul.f32 %v668, %v353
      %v813 = vmul.f32 %v669, %v354
      %v814 = vmul.f32 %v670, %v355
      %v815 = vmul.f32 %v671, %v356
      %v816 = vmul.f32 %v672, %v357
      %v817 = vmul.f32 %v673, %v358
      %v818 = vmul.f32 %v674, %v359
      %v819 = vmul.f32 %v675, %v360
      %v820 = vmul.f32 %v676, %v361
      %v821 = vmul.f32 %v677, %v362
      %v822 = vmul.f32 %v678, %v363
      %v823 = vmul.f32 %v679, %v364
      %v824 = vmul.f32 %v680, %v365
      %v825 = vmul.f32 %v681, %v366
      %v826 = vmul.f32 %v682, %v367
      %v827 = vmul.f32 %v683, %v368
      %v828 = vmul.f32 %v684, %v369
      %v829 = vmul.f32 %v685, %v370
      %v830 = vmul.f32 %v686, %v371
      %v831 = vmul.f32 %v687, %v372
      %v832 = vmul.f32 %v688, %v373
      %v833 = vmul.f32 %v689, %v374
      %v834 = vmul.f32 %v690, %v375
      %v835 = vmul.f32 %v691, %v376
      %v836 = vmul.f32 %v692, %v377
      %v837 = vmul.f32 %v693, %v378
      %v838 = vmul.f32 %v694, %v379
      %v839 = vmul.f32 %v695, %v380
      %v840 = vadd.f32 %v768, %v804
      %v841 = vadd.f32 %v769, %v805
      %v842 = vadd.f32 %v770, %v806
      %v843 = vadd.f32 %v771, %v807
      %v844 = vadd.f32 %v772, %v808
      %v845 = vadd.f32 %v773, %v809
      %v846 = vadd.f32 %v774, %v810
      %v847 = vadd.f32 %v775, %v811
      %v848 = vadd.f32 %v776, %v812
      %v849 = vadd.f32 %v777, %v813
      %v850 = vadd.f32 %v778, %v814
      %v851 = vadd.f32 %v779, %v815
      %v852 = vadd.f32 %v780, %v816
      %v853 = vadd.f32 %v781, %v817
      %v854 = vadd.f32 %v782, %v818
      %v855 = vadd.f32 %v783, %v819
      %v856 = vadd.f32 %v784, %v820
      %v857 = vadd.f32 %v785, %v821
      %v858 = vadd.f32 %v786, %v822
      %v859 = vadd.f32 %v787, %v823
      %v860 = vadd.f32 %v788, %v824
      %v861 = vadd.f32 %v789, %v825
      %v862 = vadd.f32 %v790, %v826
      %v863 = vadd.f32 %v791, %v827
      %v864 = vadd.f32 %v792, %v828
      %v865 = vadd.f32 %v793, %v829
      %v866 = vadd.f32 %v794, %v830
      %v867 = vadd.f32 %v795, %v831
      %v868 = vadd.f32 %v796, %v832
      %v869 = vadd.f32 %v797, %v833
      %v870 = vadd.f32 %v798, %v834
      %v871 = vadd.f32 %v799, %v835
      %v872 = vadd.f32 %v800, %v836
      %v873 = vadd.f32 %v801, %v837
      %v874 = vadd.f32 %v802, %v838
      %v875 = vadd.f32 %v803, %v839
      %v876 = vmul.f32 %v840, %v516
      %v877 = vmul.f32 %v841, %v517
      %v878 = vmul.f32 %v842, %v518
      %v879 = vmul.f32 %v843, %v519
      %v880 = vmul.f32 %v844, %v520
      %v881 = vmul.f32 %v845, %v521
      %v882 = vmul.f32 %v846, %v522
      %v883 = vmul.f32 %v847, %v523
      %v884 = vmul.f32 %v848, %v524
      %v885 = vmul.f32 %v849, %v525
      %v886 = vmul.f32 %v850, %v526
      %v887 = vmul.f32 %v851, %v527
      %v888 = vmul.f32 %v852, %v528
      %v889 = vmul.f32 %v853, %v529
      %v890 = vmul.f32 %v854, %v530
      %v891 = vmul.f32 %v855, %v531
      %v892 = vmul.f32 %v856, %v532
      %v893 = vmul.f32 %v857, %v533
      %v894 = vmul.f32 %v858, %v534
      %v895 = vmul.f32 %v859, %v535
      %v896 = vmul.f32 %v860, %v536
      %v897 = vmul.f32 %v861, %v537
      %v898 = vmul.f32 %v862, %v538
      %v899 = vmul.f32 %v863, %v539
      %v900 = vmul.f32 %v864, %v540
      %v901 = vmul.f32 %v865, %v541
      %v902 = vmul.f32 %v866, %v542
      %v903 = vmul.f32 %v867, %v543
      %v904 = vmul.f32 %v868, %v544
      %v905 = vmul.f32 %v869, %v545
      %v906 = vmul.f32 %v870, %v546
      %v907 = vmul.f32 %v871, %v547
      %v908 = vmul.f32 %v872, %v548
      %v909 = vmul.f32 %v873, %v549
      %v910 = vmul.f32 %v874, %v550
      %v911 = vmul.f32 %v875, %v551
      %v912 = vmul.f32 %v345, %v516
      %v913 = vmul.f32 %v346, %v517
      %v914 = vmul.f32 %v347, %v518
      %v915 = vmul.f32 %v348, %v519
      %v916 = vmul.f32 %v349, %v520
      %v917 = vmul.f32 %v350, %v521
      %v918 = vmul.f32 %v351, %v522
      %v919 = vmul.f32 %v352, %v523
      %v920 = vmul.f32 %v353, %v524
      %v921 = vmul.f32 %v354, %v525
      %v922 = vmul.f32 %v355, %v526
      %v923 = vmul.f32 %v356, %v527
      %v924 = vmul.f32 %v357, %v528
      %v925 = vmul.f32 %v358, %v529
      %v926 = vmul.f32 %v359, %v530
      %v927 = vmul.f32 %v360, %v531
      %v928 = vmul.f32 %v361, %v532
      %v929 = vmul.f32 %v362, %v533
      %v930 = vmul.f32 %v363, %v534
      %v931 = vmul.f32 %v364, %v535
      %v932 = vmul.f32 %v365, %v536
      %v933 = vmul.f32 %v366, %v537
      %v934 = vmul.f32 %v367, %v538
      %v935 = vmul.f32 %v368, %v539
      %v936 = vmul.f32 %v369, %v540
      %v937 = vmul.f32 %v370, %v541
      %v938 = vmul.f32 %v371, %v542
      %v939 = vmul.f32 %v372, %v543
      %v940 = vmul.f32 %v373, %v544
      %v941 = vmul.f32 %v374, %v545
      %v942 = vmul.f32 %v375, %v546
      %v943 = vmul.f32 %v376, %v547
      %v944 = vmul.f32 %v377, %v548
      %v945 = vmul.f32 %v378, %v549
      %v946 = vmul.f32 %v379, %v550
      %v947 = vmul.f32 %v380, %v551
      %v948 = vld [vmem:[%s3] sm:$0xff]
      %v949 = vld [vmem:[%s3 + $0x8] sm:$0xff]
      %v950 = vld [vmem:[%s3 + $0x10] sm:$0xff]
      %v951 = vld [vmem:[%s3 + $0x18] sm:$0xff]
      %v952 = vld [vmem:[%s3 + $0x20] sm:$0xff]
      %v953 = vld [vmem:[%s3 + $0x28] sm:$0xff]
      %v954 = vld [vmem:[%s3 + $0x30] sm:$0xff]
      %v955 = vld [vmem:[%s3 + $0x38] sm:$0xff]
      %v956 = vld [vmem:[%s3 + $0x40] sm:$0xff]
      %v957 = vld [vmem:[%s3 + $0x48] sm:$0xff]
      %v958 = vld [vmem:[%s3 + $0x50] sm:$0xff]
      %v959 = vld [vmem:[%s3 + $0x58] sm:$0xff]
      %v960 = vld [vmem:[%s3 + $0x60] sm:$0xff]
      %v961 = vld [vmem:[%s3 + $0x68] sm:$0xff]
      %v962 = vld [vmem:[%s3 + $0x70] sm:$0xff]
      %v963 = vld [vmem:[%s3 + $0x78] sm:$0xff]
      %v964 = vld [vmem:[%s3 + $0x80] sm:$0xff]
      %v965 = vld [vmem:[%s3 + $0x88] sm:$0xff]
      %v966 = vld [vmem:[%s3 + $0x90] sm:$0xff]
      %v967 = vld [vmem:[%s3 + $0x98] sm:$0xff]
      %v968 = vld [vmem:[%s3 + $0xa0] sm:$0xff]
      %v969 = vld [vmem:[%s3 + $0xa8] sm:$0xff]
      %v970 = vld [vmem:[%s3 + $0xb0] sm:$0xff]
      %v971 = vld [vmem:[%s3 + $0xb8] sm:$0xff]
      %v972 = vld [vmem:[%s3 + $0xc0] sm:$0xff]
      %v973 = vld [vmem:[%s3 + $0xc8] sm:$0xff]
      %v974 = vld [vmem:[%s3 + $0xd0] sm:$0xff]
      %v975 = vld [vmem:[%s3 + $0xd8] sm:$0xff]
      %v976 = vld [vmem:[%s3 + $0xe0] sm:$0xff]
      %v977 = vld [vmem:[%s3 + $0xe8] sm:$0xff]
      %v978 = vld [vmem:[%s3 + $0xf0] sm:$0xff]
      %v979 = vld [vmem:[%s3 + $0xf8] sm:$0xff]
      %v980 = vld [vmem:[%s3 + $0x100] sm:$0xff]
      %v981 = vld [vmem:[%s3 + $0x108] sm:$0xff]
      %v982 = vld [vmem:[%s3 + $0x110] sm:$0xff]
      %v983 = vld [vmem:[%s3 + $0x118] sm:$0xff]
      %v984 = vld [vmem:[%s3 + $0x120] sm:$0xff]
      %v985 = vld [vmem:[%s3 + $0x128] sm:$0xff]
      %v986 = vld [vmem:[%s3 + $0x130] sm:$0xff]
      %v987 = vld [vmem:[%s3 + $0x138] sm:$0xff]
      %v988 = vld [vmem:[%s3 + $0x140] sm:$0xff]
      %v989 = vld [vmem:[%s3 + $0x148] sm:$0xff]
      %v990 = vld [vmem:[%s3 + $0x150] sm:$0xff]
      %v991 = vld [vmem:[%s3 + $0x158] sm:$0xff]
      %v992 = vld [vmem:[%s3 + $0x160] sm:$0xff]
      %v993 = vld [vmem:[%s3 + $0x168] sm:$0xff]
      %v994 = vld [vmem:[%s3 + $0x170] sm:$0xff]
      %v995 = vld [vmem:[%s3 + $0x178] sm:$0xff]
      %v996 = vld [vmem:[%s3 + $0x180] sm:$0xff]
      %v997 = vld [vmem:[%s3 + $0x188] sm:$0xff]
      %v998 = vld [vmem:[%s3 + $0x190] sm:$0xff]
      %v999 = vld [vmem:[%s3 + $0x198] sm:$0xff]
      %v1000 = vld [vmem:[%s3 + $0x1a0] sm:$0xff]
      %v1001 = vld [vmem:[%s3 + $0x1a8] sm:$0xff]
      %v1002 = vld [vmem:[%s3 + $0x1b0] sm:$0xff]
      %v1003 = vld [vmem:[%s3 + $0x1b8] sm:$0xff]
      %v1004 = vld [vmem:[%s3 + $0x1c0] sm:$0xff]
      %v1005 = vld [vmem:[%s3 + $0x1c8] sm:$0xff]
      %v1006 = vld [vmem:[%s3 + $0x1d0] sm:$0xff]
      %v1007 = vld [vmem:[%s3 + $0x1d8] sm:$0xff]
      %v1008 = vld [vmem:[%s3 + $0x1e0] sm:$0xff]
      %v1009 = vld [vmem:[%s3 + $0x1e8] sm:$0xff]
      %v1010 = vld [vmem:[%s3 + $0x1f0] sm:$0xff]
      %v1011 = vld [vmem:[%s3 + $0x1f8] sm:$0xff]
      %v1012 = vld [vmem:[%s3 + $0x200] sm:$0xff]
      %v1013 = vld [vmem:[%s3 + $0x208] sm:$0xff]
      %v1014 = vld [vmem:[%s3 + $0x210] sm:$0xff]
      %v1015 = vld [vmem:[%s3 + $0x218] sm:$0xff]
      %v1016 = vld [vmem:[%s3 + $0x220] sm:$0xff]
      %v1017 = vld [vmem:[%s3 + $0x228] sm:$0xff]
      %v1018 = vld [vmem:[%s3 + $0x230] sm:$0xff]
      %v1019 = vld [vmem:[%s3 + $0x238] sm:$0xff]
      %v1020 = vld [vmem:[%s3 + $0x240] sm:$0xff]
      %v1021 = vld [vmem:[%s3 + $0x248] sm:$0xff]
      %v1022 = vld [vmem:[%s3 + $0x250] sm:$0xff]
      %v1023 = vld [vmem:[%s3 + $0x258] sm:$0xff]
      %v1024 = vld [vmem:[%s3 + $0x260] sm:$0xff]
      %v1025 = vld [vmem:[%s3 + $0x268] sm:$0xff]
      %v1026 = vld [vmem:[%s3 + $0x270] sm:$0xff]
      %v1027 = vld [vmem:[%s3 + $0x278] sm:$0xff]
      %v1028 = vld [vmem:[%s3 + $0x280] sm:$0xff]
      %v1029 = vld [vmem:[%s3 + $0x288] sm:$0xff]
      %v1030 = vld [vmem:[%s3 + $0x290] sm:$0xff]
      %v1031 = vld [vmem:[%s3 + $0x298] sm:$0xff]
      %v1032 = vld [vmem:[%s3 + $0x2a0] sm:$0xff]
      %v1033 = vld [vmem:[%s3 + $0x2a8] sm:$0xff]
      %v1034 = vld [vmem:[%s3 + $0x2b0] sm:$0xff]
      %v1035 = vld [vmem:[%s3 + $0x2b8] sm:$0xff]
      %v1036 = vld [vmem:[%s3 + $0x2c0] sm:$0xff]
      %v1037 = vld [vmem:[%s3 + $0x2c8] sm:$0xff]
      %v1038 = vld [vmem:[%s3 + $0x2d0] sm:$0xff]
      %v1039 = vld [vmem:[%s3 + $0x2d8] sm:$0xff]
      %v1040 = vld [vmem:[%s3 + $0x2e0] sm:$0xff]
      %v1041 = vld [vmem:[%s3 + $0x2e8] sm:$0xff]
      %v1042 = vld [vmem:[%s3 + $0x2f0] sm:$0xff]
      %v1043 = vld [vmem:[%s3 + $0x2f8] sm:$0xff]
      %v1044 = vld [vmem:[%s3 + $0x300] sm:$0xff]
      %v1045 = vld [vmem:[%s3 + $0x308] sm:$0xff]
      %v1046 = vld [vmem:[%s3 + $0x310] sm:$0xff]
      %v1047 = vld [vmem:[%s3 + $0x318] sm:$0xff]
      %v1048 = vld [vmem:[%s3 + $0x320] sm:$0xff]
      %v1049 = vld [vmem:[%s3 + $0x328] sm:$0xff]
      %v1050 = vld [vmem:[%s3 + $0x330] sm:$0xff]
      %v1051 = vld [vmem:[%s3 + $0x338] sm:$0xff]
      %v1052 = vld [vmem:[%s3 + $0x340] sm:$0xff]
      %v1053 = vld [vmem:[%s3 + $0x348] sm:$0xff]
      %v1054 = vld [vmem:[%s3 + $0x350] sm:$0xff]
      %v1055 = vld [vmem:[%s3 + $0x358] sm:$0xff]
      %v1056 = vld [vmem:[%s3 + $0x360] sm:$0xff]
      %v1057 = vld [vmem:[%s3 + $0x368] sm:$0xff]
      %v1058 = vld [vmem:[%s3 + $0x370] sm:$0xff]
      %v1059 = vld [vmem:[%s3 + $0x378] sm:$0xff]
      %v1060 = vld [vmem:[%s3 + $0x380] sm:$0xff]
      %v1061 = vld [vmem:[%s3 + $0x388] sm:$0xff]
      %v1062 = vld [vmem:[%s3 + $0x390] sm:$0xff]
      %v1063 = vld [vmem:[%s3 + $0x398] sm:$0xff]
      %v1064 = vld [vmem:[%s3 + $0x3a0] sm:$0xff]
      %v1065 = vld [vmem:[%s3 + $0x3a8] sm:$0xff]
      %v1066 = vld [vmem:[%s3 + $0x3b0] sm:$0xff]
      %v1067 = vld [vmem:[%s3 + $0x3b8] sm:$0xff]
      %v1068 = vld [vmem:[%s3 + $0x3c0] sm:$0xff]
      %v1069 = vld [vmem:[%s3 + $0x3c8] sm:$0xff]
      %v1070 = vld [vmem:[%s3 + $0x3d0] sm:$0xff]
      %v1071 = vld [vmem:[%s3 + $0x3d8] sm:$0xff]
      %v1072 = vld [vmem:[%s3 + $0x3e0] sm:$0xff]
      %v1073 = vld [vmem:[%s3 + $0x3e8] sm:$0xff]
      %v1074 = vld [vmem:[%s3 + $0x3f0] sm:$0xff]
      %v1075 = vld [vmem:[%s3 + $0x3f8] sm:$0xff]
      %v1076 = vld [vmem:[%s3 + $0x400] sm:$0xff]
      %v1077 = vld [vmem:[%s3 + $0x408] sm:$0xff]
      %v1078 = vld [vmem:[%s3 + $0x410] sm:$0xff]
      %v1079 = vld [vmem:[%s3 + $0x418] sm:$0xff]
      %v1080 = vld [vmem:[%s3 + $0x420] sm:$0xff]
      %v1081 = vld [vmem:[%s3 + $0x428] sm:$0xff]
      %v1082 = vld [vmem:[%s3 + $0x430] sm:$0xff]
      %v1083 = vld [vmem:[%s3 + $0x438] sm:$0xff]
      %v1084 = vld [vmem:[%s3 + $0x440] sm:$0xff]
      %v1085 = vld [vmem:[%s3 + $0x448] sm:$0xff]
      %v1086 = vld [vmem:[%s3 + $0x450] sm:$0xff]
      %v1087 = vld [vmem:[%s3 + $0x458] sm:$0xff]
      %v1088 = vld [vmem:[%s3 + $0x460] sm:$0xff]
      %v1089 = vld [vmem:[%s3 + $0x468] sm:$0xff]
      %v1090 = vld [vmem:[%s3 + $0x470] sm:$0xff]
      %v1091 = vld [vmem:[%s3 + $0x478] sm:$0xff]
      %v1092 = vld [vmem:[#allocation2] sm:$0xff]
      %v1093 = vld [vmem:[#allocation2 + $0x8] sm:$0xff]
      %v1094 = vld [vmem:[#allocation2 + $0x10] sm:$0xff]
      %v1095 = vld [vmem:[#allocation2 + $0x18] sm:$0xff]
      %v1096 = vmul.f32 %v876, %v912
      %v1097 = vmul.f32 %v877, %v913
      %v1098 = vmul.f32 %v878, %v914
      %v1099 = vmul.f32 %v879, %v915
      %v1100 = vmul.f32 %v880, %v916
      %v1101 = vmul.f32 %v881, %v917
      %v1102 = vmul.f32 %v882, %v918
      %v1103 = vmul.f32 %v883, %v919
      %v1104 = vmul.f32 %v884, %v920
      %v1105 = vmul.f32 %v885, %v921
      %v1106 = vmul.f32 %v886, %v922
      %v1107 = vmul.f32 %v887, %v923
      %v1108 = vmul.f32 %v888, %v924
      %v1109 = vmul.f32 %v889, %v925
      %v1110 = vmul.f32 %v890, %v926
      %v1111 = vmul.f32 %v891, %v927
      %v1112 = vmul.f32 %v892, %v928
      %v1113 = vmul.f32 %v893, %v929
      %v1114 = vmul.f32 %v894, %v930
      %v1115 = vmul.f32 %v895, %v931
      %v1116 = vmul.f32 %v896, %v932
      %v1117 = vmul.f32 %v897, %v933
      %v1118 = vmul.f32 %v898, %v934
      %v1119 = vmul.f32 %v899, %v935
      %v1120 = vmul.f32 %v900, %v936
      %v1121 = vmul.f32 %v901, %v937
      %v1122 = vmul.f32 %v902, %v938
      %v1123 = vmul.f32 %v903, %v939
      %v1124 = vmul.f32 %v904, %v940
      %v1125 = vmul.f32 %v905, %v941
      %v1126 = vmul.f32 %v906, %v942
      %v1127 = vmul.f32 %v907, %v943
      %v1128 = vmul.f32 %v908, %v944
      %v1129 = vmul.f32 %v909, %v945
      %v1130 = vmul.f32 %v910, %v946
      %v1131 = vmul.f32 %v911, %v947
      %1132 = vmatpush.msra.mxu0 %v963
      %1133 = vmatpush.msra.mxu0 %v962
      %1134 = vmatpush.msra.mxu0 %v961
      %1135 = vmatpush.msra.mxu0 %v960
      %1136 = vmatpush.msra.mxu0 %v959
      %1137 = vmatpush.msra.mxu0 %v958
      %1138 = vmatpush.msra.mxu0 %v957
      %1139 = vmatpush.msra.mxu0 %v956
      %1140 = vmatpush.msra.mxu0 %v955
      %1141 = vmatpush.msra.mxu0 %v954
      %1142 = vmatpush.msra.mxu0 %v953
      %1143 = vmatpush.msra.mxu0 %v952
      %1144 = vmatpush.msra.mxu0 %v951
      %1145 = vmatpush.msra.mxu0 %v950
      %1146 = vmatpush.msra.mxu0 %v949
      %1147 = vmatpush.msra.mxu0 %v948
      %1148 = vmatmul.f32.gmra.mxu0 %v1096
      %v1149 = vpop.f32.mrf.mxu0
      %v1150 = vadd.f32 0.0, %v1149
      %1151 = vmatmul.f32.gmra.mxu0 %v1105
      %v1152 = vpop.f32.mrf.mxu0
      %v1153 = vadd.f32 0.0, %v1152
      %1154 = vmatmul.f32.gmra.mxu0 %v1114
      %v1155 = vpop.f32.mrf.mxu0
      %v1156 = vadd.f32 0.0, %v1155
      %1157 = vmatmul.f32.gmra.mxu0 %v1123
      %v1158 = vpop.f32.mrf.mxu0
      %v1159 = vadd.f32 0.0, %v1158
      %1160 = vdwg.mxu0
      %1161 = vmatpush.msra.mxu0 %v979
      %1162 = vmatpush.msra.mxu0 %v978
      %1163 = vmatpush.msra.mxu0 %v977
      %1164 = vmatpush.msra.mxu0 %v976
      %1165 = vmatpush.msra.mxu0 %v975
      %1166 = vmatpush.msra.mxu0 %v974
      %1167 = vmatpush.msra.mxu0 %v973
      %1168 = vmatpush.msra.mxu0 %v972
      %1169 = vmatpush.msra.mxu0 %v971
      %1170 = vmatpush.msra.mxu0 %v970
      %1171 = vmatpush.msra.mxu0 %v969
      %1172 = vmatpush.msra.mxu0 %v968
      %1173 = vmatpush.msra.mxu0 %v967
      %1174 = vmatpush.msra.mxu0 %v966
      %1175 = vmatpush.msra.mxu0 %v965
      %1176 = vmatpush.msra.mxu0 %v964
      %1177 = vmatmul.f32.gmra.mxu0 %v1097
      %v1178 = vpop.f32.mrf.mxu0
      %v1179 = vadd.f32 %v1150, %v1178
      %1180 = vmatmul.f32.gmra.mxu0 %v1106
      %v1181 = vpop.f32.mrf.mxu0
      %v1182 = vadd.f32 %v1153, %v1181
      %1183 = vmatmul.f32.gmra.mxu0 %v1115
      %v1184 = vpop.f32.mrf.mxu0
      %v1185 = vadd.f32 %v1156, %v1184
      %1186 = vmatmul.f32.gmra.mxu0 %v1124
      %v1187 = vpop.f32.mrf.mxu0
      %v1188 = vadd.f32 %v1159, %v1187
      %1189 = vdwg.mxu0
      %1190 = vmatpush.msra.mxu0 %v995
      %1191 = vmatpush.msra.mxu0 %v994
      %1192 = vmatpush.msra.mxu0 %v993
      %1193 = vmatpush.msra.mxu0 %v992
      %1194 = vmatpush.msra.mxu0 %v991
      %1195 = vmatpush.msra.mxu0 %v990
      %1196 = vmatpush.msra.mxu0 %v989
      %1197 = vmatpush.msra.mxu0 %v988
      %1198 = vmatpush.msra.mxu0 %v987
      %1199 = vmatpush.msra.mxu0 %v986
      %1200 = vmatpush.msra.mxu0 %v985
      %1201 = vmatpush.msra.mxu0 %v984
      %1202 = vmatpush.msra.mxu0 %v983
      %1203 = vmatpush.msra.mxu0 %v982
      %1204 = vmatpush.msra.mxu0 %v981
      %1205 = vmatpush.msra.mxu0 %v980
      %1206 = vmatmul.f32.gmra.mxu0 %v1098
      %v1207 = vpop.f32.mrf.mxu0
      %v1208 = vadd.f32 %v1179, %v1207
      %1209 = vmatmul.f32.gmra.mxu0 %v1107
      %v1210 = vpop.f32.mrf.mxu0
      %v1211 = vadd.f32 %v1182, %v1210
      %1212 = vmatmul.f32.gmra.mxu0 %v1116
      %v1213 = vpop.f32.mrf.mxu0
      %v1214 = vadd.f32 %v1185, %v1213
      %1215 = vmatmul.f32.gmra.mxu0 %v1125
      %v1216 = vpop.f32.mrf.mxu0
      %v1217 = vadd.f32 %v1188, %v1216
      %1218 = vdwg.mxu0
      %1219 = vmatpush.msra.mxu0 %v1011
      %1220 = vmatpush.msra.mxu0 %v1010
      %1221 = vmatpush.msra.mxu0 %v1009
      %1222 = vmatpush.msra.mxu0 %v1008
      %1223 = vmatpush.msra.mxu0 %v1007
      %1224 = vmatpush.msra.mxu0 %v1006
      %1225 = vmatpush.msra.mxu0 %v1005
      %1226 = vmatpush.msra.mxu0 %v1004
      %1227 = vmatpush.msra.mxu0 %v1003
      %1228 = vmatpush.msra.mxu0 %v1002
      %1229 = vmatpush.msra.mxu0 %v1001
      %1230 = vmatpush.msra.mxu0 %v1000
      %1231 = vmatpush.msra.mxu0 %v999
      %1232 = vmatpush.msra.mxu0 %v998
      %1233 = vmatpush.msra.mxu0 %v997
      %1234 = vmatpush.msra.mxu0 %v996
      %1235 = vmatmul.f32.gmra.mxu0 %v1099
      %v1236 = vpop.f32.mrf.mxu0
      %v1237 = vadd.f32 %v1208, %v1236
      %1238 = vmatmul.f32.gmra.mxu0 %v1108
      %v1239 = vpop.f32.mrf.mxu0
      %v1240 = vadd.f32 %v1211, %v1239
      %1241 = vmatmul.f32.gmra.mxu0 %v1117
      %v1242 = vpop.f32.mrf.mxu0
      %v1243 = vadd.f32 %v1214, %v1242
      %1244 = vmatmul.f32.gmra.mxu0 %v1126
      %v1245 = vpop.f32.mrf.mxu0
      %v1246 = vadd.f32 %v1217, %v1245
      %1247 = vdwg.mxu0
      %1248 = vmatpush.msra.mxu0 %v1027
      %1249 = vmatpush.msra.mxu0 %v1026
      %1250 = vmatpush.msra.mxu0 %v1025
      %1251 = vmatpush.msra.mxu0 %v1024
      %1252 = vmatpush.msra.mxu0 %v1023
      %1253 = vmatpush.msra.mxu0 %v1022
      %1254 = vmatpush.msra.mxu0 %v1021
      %1255 = vmatpush.msra.mxu0 %v1020
      %1256 = vmatpush.msra.mxu0 %v1019
      %1257 = vmatpush.msra.mxu0 %v1018
      %1258 = vmatpush.msra.mxu0 %v1017
      %1259 = vmatpush.msra.mxu0 %v1016
      %1260 = vmatpush.msra.mxu0 %v1015
      %1261 = vmatpush.msra.mxu0 %v1014
      %1262 = vmatpush.msra.mxu0 %v1013
      %1263 = vmatpush.msra.mxu0 %v1012
      %1264 = vmatmul.f32.gmra.mxu0 %v1100
      %v1265 = vpop.f32.mrf.mxu0
      %v1266 = vadd.f32 %v1237, %v1265
      %1267 = vmatmul.f32.gmra.mxu0 %v1109
      %v1268 = vpop.f32.mrf.mxu0
      %v1269 = vadd.f32 %v1240, %v1268
      %1270 = vmatmul.f32.gmra.mxu0 %v1118
      %v1271 = vpop.f32.mrf.mxu0
      %v1272 = vadd.f32 %v1243, %v1271
      %1273 = vmatmul.f32.gmra.mxu0 %v1127
      %v1274 = vpop.f32.mrf.mxu0
      %v1275 = vadd.f32 %v1246, %v1274
      %1276 = vdwg.mxu0
      %1277 = vmatpush.msra.mxu0 %v1043
      %1278 = vmatpush.msra.mxu0 %v1042
      %1279 = vmatpush.msra.mxu0 %v1041
      %1280 = vmatpush.msra.mxu0 %v1040
      %1281 = vmatpush.msra.mxu0 %v1039
      %1282 = vmatpush.msra.mxu0 %v1038
      %1283 = vmatpush.msra.mxu0 %v1037
      %1284 = vmatpush.msra.mxu0 %v1036
      %1285 = vmatpush.msra.mxu0 %v1035
      %1286 = vmatpush.msra.mxu0 %v1034
      %1287 = vmatpush.msra.mxu0 %v1033
      %1288 = vmatpush.msra.mxu0 %v1032
      %1289 = vmatpush.msra.mxu0 %v1031
      %1290 = vmatpush.msra.mxu0 %v1030
      %1291 = vmatpush.msra.mxu0 %v1029
      %1292 = vmatpush.msra.mxu0 %v1028
      %1293 = vmatmul.f32.gmra.mxu0 %v1101
      %v1294 = vpop.f32.mrf.mxu0
      %v1295 = vadd.f32 %v1266, %v1294
      %1296 = vmatmul.f32.gmra.mxu0 %v1110
      %v1297 = vpop.f32.mrf.mxu0
      %v1298 = vadd.f32 %v1269, %v1297
      %1299 = vmatmul.f32.gmra.mxu0 %v1119
      %v1300 = vpop.f32.mrf.mxu0
      %v1301 = vadd.f32 %v1272, %v1300
      %1302 = vmatmul.f32.gmra.mxu0 %v1128
      %v1303 = vpop.f32.mrf.mxu0
      %v1304 = vadd.f32 %v1275, %v1303
      %1305 = vdwg.mxu0
      %1306 = vmatpush.msra.mxu0 %v1059
      %1307 = vmatpush.msra.mxu0 %v1058
      %1308 = vmatpush.msra.mxu0 %v1057
      %1309 = vmatpush.msra.mxu0 %v1056
      %1310 = vmatpush.msra.mxu0 %v1055
      %1311 = vmatpush.msra.mxu0 %v1054
      %1312 = vmatpush.msra.mxu0 %v1053
      %1313 = vmatpush.msra.mxu0 %v1052
      %1314 = vmatpush.msra.mxu0 %v1051
      %1315 = vmatpush.msra.mxu0 %v1050
      %1316 = vmatpush.msra.mxu0 %v1049
      %1317 = vmatpush.msra.mxu0 %v1048
      %1318 = vmatpush.msra.mxu0 %v1047
      %1319 = vmatpush.msra.mxu0 %v1046
      %1320 = vmatpush.msra.mxu0 %v1045
      %1321 = vmatpush.msra.mxu0 %v1044
      %1322 = vmatmul.f32.gmra.mxu0 %v1102
      %v1323 = vpop.f32.mrf.mxu0
      %v1324 = vadd.f32 %v1295, %v1323
      %1325 = vmatmul.f32.gmra.mxu0 %v1111
      %v1326 = vpop.f32.mrf.mxu0
      %v1327 = vadd.f32 %v1298, %v1326
      %1328 = vmatmul.f32.gmra.mxu0 %v1120
      %v1329 = vpop.f32.mrf.mxu0
      %v1330 = vadd.f32 %v1301, %v1329
      %1331 = vmatmul.f32.gmra.mxu0 %v1129
      %v1332 = vpop.f32.mrf.mxu0
      %v1333 = vadd.f32 %v1304, %v1332
      %1334 = vdwg.mxu0
      %1335 = vmatpush.msra.mxu0 %v1075
      %1336 = vmatpush.msra.mxu0 %v1074
      %1337 = vmatpush.msra.mxu0 %v1073
      %1338 = vmatpush.msra.mxu0 %v1072
      %1339 = vmatpush.msra.mxu0 %v1071
      %1340 = vmatpush.msra.mxu0 %v1070
      %1341 = vmatpush.msra.mxu0 %v1069
      %1342 = vmatpush.msra.mxu0 %v1068
      %1343 = vmatpush.msra.mxu0 %v1067
      %1344 = vmatpush.msra.mxu0 %v1066
      %1345 = vmatpush.msra.mxu0 %v1065
      %1346 = vmatpush.msra.mxu0 %v1064
      %1347 = vmatpush.msra.mxu0 %v1063
      %1348 = vmatpush.msra.mxu0 %v1062
      %1349 = vmatpush.msra.mxu0 %v1061
      %1350 = vmatpush.msra.mxu0 %v1060
      %1351 = vmatmul.f32.gmra.mxu0 %v1103
      %v1352 = vpop.f32.mrf.mxu0
      %v1353 = vadd.f32 %v1324, %v1352
      %1354 = vmatmul.f32.gmra.mxu0 %v1112
      %v1355 = vpop.f32.mrf.mxu0
      %v1356 = vadd.f32 %v1327, %v1355
      %1357 = vmatmul.f32.gmra.mxu0 %v1121
      %v1358 = vpop.f32.mrf.mxu0
      %v1359 = vadd.f32 %v1330, %v1358
      %1360 = vmatmul.f32.gmra.mxu0 %v1130
      %v1361 = vpop.f32.mrf.mxu0
      %v1362 = vadd.f32 %v1333, %v1361
      %1363 = vdwg.mxu0
      %1364 = vmatpush.msra.mxu0 %v1091
      %1365 = vmatpush.msra.mxu0 %v1090
      %1366 = vmatpush.msra.mxu0 %v1089
      %1367 = vmatpush.msra.mxu0 %v1088
      %1368 = vmatpush.msra.mxu0 %v1087
      %1369 = vmatpush.msra.mxu0 %v1086
      %1370 = vmatpush.msra.mxu0 %v1085
      %1371 = vmatpush.msra.mxu0 %v1084
      %1372 = vmatpush.msra.mxu0 %v1083
      %1373 = vmatpush.msra.mxu0 %v1082
      %1374 = vmatpush.msra.mxu0 %v1081
      %1375 = vmatpush.msra.mxu0 %v1080
      %1376 = vmatpush.msra.mxu0 %v1079
      %1377 = vmatpush.msra.mxu0 %v1078
      %1378 = vmatpush.msra.mxu0 %v1077
      %1379 = vmatpush.msra.mxu0 %v1076
      %1380 = vmatmul.f32.gmra.mxu0 %v1104
      %v1381 = vpop.f32.mrf.mxu0
      %v1382 = vadd.f32 %v1353, %v1381
      %1383 = vmatmul.f32.gmra.mxu0 %v1113
      %v1384 = vpop.f32.mrf.mxu0
      %v1385 = vadd.f32 %v1356, %v1384
      %1386 = vmatmul.f32.gmra.mxu0 %v1122
      %v1387 = vpop.f32.mrf.mxu0
      %v1388 = vadd.f32 %v1359, %v1387
      %1389 = vmatmul.f32.gmra.mxu0 %v1131
      %v1390 = vpop.f32.mrf.mxu0
      %v1391 = vadd.f32 %v1362, %v1390
      %1392 = vdwg.mxu0
      %v1393 = vadd.f32 %v1092, %v1382
      %v1394 = vadd.f32 %v1093, %v1385
      %v1395 = vadd.f32 %v1094, %v1388
      %v1396 = vadd.f32 %v1095, %v1391
      %vm1397 = vcmask 72704
      %1398 = vst.msk [vmem:[#allocation2] sm:$0xff] %vm1397, %v1393
      %1399 = vst.msk [vmem:[#allocation2 + $0x8] sm:$0xff] %vm1397, %v1394
      %1400 = vst.msk [vmem:[#allocation2 + $0x10] sm:$0xff] %vm1397, %v1395
      %1401 = vst.msk [vmem:[#allocation2 + $0x18] sm:$0xff] %vm1397, %v1396
      %v1402 = vld [vmem:[#allocation3] sm:$0xff]
      %v1403 = vld [vmem:[#allocation3 + $0x8] sm:$0xff]
      %v1404 = vld [vmem:[#allocation3 + $0x10] sm:$0xff]
      %v1405 = vld [vmem:[#allocation3 + $0x18] sm:$0xff]
      %1406 = vmatpush.msra.mxu0 %v963
      %1407 = vmatpush.msra.mxu0 %v962
      %1408 = vmatpush.msra.mxu0 %v961
      %1409 = vmatpush.msra.mxu0 %v960
      %1410 = vmatpush.msra.mxu0 %v959
      %1411 = vmatpush.msra.mxu0 %v958
      %1412 = vmatpush.msra.mxu0 %v957
      %1413 = vmatpush.msra.mxu0 %v956
      %1414 = vmatpush.msra.mxu0 %v955
      %1415 = vmatpush.msra.mxu0 %v954
      %1416 = vmatpush.msra.mxu0 %v953
      %1417 = vmatpush.msra.mxu0 %v952
      %1418 = vmatpush.msra.mxu0 %v951
      %1419 = vmatpush.msra.mxu0 %v950
      %1420 = vmatpush.msra.mxu0 %v949
      %1421 = vmatpush.msra.mxu0 %v948
      %1422 = vmatmul.f32.gmra.mxu0 %v876
      %v1423 = vpop.f32.mrf.mxu0
      %v1424 = vadd.f32 0.0, %v1423
      %1425 = vmatmul.f32.gmra.mxu0 %v885
      %v1426 = vpop.f32.mrf.mxu0
      %v1427 = vadd.f32 0.0, %v1426
      %1428 = vmatmul.f32.gmra.mxu0 %v894
      %v1429 = vpop.f32.mrf.mxu0
      %v1430 = vadd.f32 0.0, %v1429
      %1431 = vmatmul.f32.gmra.mxu0 %v903
      %v1432 = vpop.f32.mrf.mxu0
      %v1433 = vadd.f32 0.0, %v1432
      %1434 = vdwg.mxu0
      %1435 = vmatpush.msra.mxu0 %v979
      %1436 = vmatpush.msra.mxu0 %v978
      %1437 = vmatpush.msra.mxu0 %v977
      %1438 = vmatpush.msra.mxu0 %v976
      %1439 = vmatpush.msra.mxu0 %v975
      %1440 = vmatpush.msra.mxu0 %v974
      %1441 = vmatpush.msra.mxu0 %v973
      %1442 = vmatpush.msra.mxu0 %v972
      %1443 = vmatpush.msra.mxu0 %v971
      %1444 = vmatpush.msra.mxu0 %v970
      %1445 = vmatpush.msra.mxu0 %v969
      %1446 = vmatpush.msra.mxu0 %v968
      %1447 = vmatpush.msra.mxu0 %v967
      %1448 = vmatpush.msra.mxu0 %v966
      %1449 = vmatpush.msra.mxu0 %v965
      %1450 = vmatpush.msra.mxu0 %v964
      %1451 = vmatmul.f32.gmra.mxu0 %v877
      %v1452 = vpop.f32.mrf.mxu0
      %v1453 = vadd.f32 %v1424, %v1452
      %1454 = vmatmul.f32.gmra.mxu0 %v886
      %v1455 = vpop.f32.mrf.mxu0
      %v1456 = vadd.f32 %v1427, %v1455
      %1457 = vmatmul.f32.gmra.mxu0 %v895
      %v1458 = vpop.f32.mrf.mxu0
      %v1459 = vadd.f32 %v1430, %v1458
      %1460 = vmatmul.f32.gmra.mxu0 %v904
      %v1461 = vpop.f32.mrf.mxu0
      %v1462 = vadd.f32 %v1433, %v1461
      %1463 = vdwg.mxu0
      %1464 = vmatpush.msra.mxu0 %v995
      %1465 = vmatpush.msra.mxu0 %v994
      %1466 = vmatpush.msra.mxu0 %v993
      %1467 = vmatpush.msra.mxu0 %v992
      %1468 = vmatpush.msra.mxu0 %v991
      %1469 = vmatpush.msra.mxu0 %v990
      %1470 = vmatpush.msra.mxu0 %v989
      %1471 = vmatpush.msra.mxu0 %v988
      %1472 = vmatpush.msra.mxu0 %v987
      %1473 = vmatpush.msra.mxu0 %v986
      %1474 = vmatpush.msra.mxu0 %v985
      %1475 = vmatpush.msra.mxu0 %v984
      %1476 = vmatpush.msra.mxu0 %v983
      %1477 = vmatpush.msra.mxu0 %v982
      %1478 = vmatpush.msra.mxu0 %v981
      %1479 = vmatpush.msra.mxu0 %v980
      %1480 = vmatmul.f32.gmra.mxu0 %v878
      %v1481 = vpop.f32.mrf.mxu0
      %v1482 = vadd.f32 %v1453, %v1481
      %1483 = vmatmul.f32.gmra.mxu0 %v887
      %v1484 = vpop.f32.mrf.mxu0
      %v1485 = vadd.f32 %v1456, %v1484
      %1486 = vmatmul.f32.gmra.mxu0 %v896
      %v1487 = vpop.f32.mrf.mxu0
      %v1488 = vadd.f32 %v1459, %v1487
      %1489 = vmatmul.f32.gmra.mxu0 %v905
      %v1490 = vpop.f32.mrf.mxu0
      %v1491 = vadd.f32 %v1462, %v1490
      %1492 = vdwg.mxu0
      %1493 = vmatpush.msra.mxu0 %v1011
      %1494 = vmatpush.msra.mxu0 %v1010
      %1495 = vmatpush.msra.mxu0 %v1009
      %1496 = vmatpush.msra.mxu0 %v1008
      %1497 = vmatpush.msra.mxu0 %v1007
      %1498 = vmatpush.msra.mxu0 %v1006
      %1499 = vmatpush.msra.mxu0 %v1005
      %1500 = vmatpush.msra.mxu0 %v1004
      %1501 = vmatpush.msra.mxu0 %v1003
      %1502 = vmatpush.msra.mxu0 %v1002
      %1503 = vmatpush.msra.mxu0 %v1001
      %1504 = vmatpush.msra.mxu0 %v1000
      %1505 = vmatpush.msra.mxu0 %v999
      %1506 = vmatpush.msra.mxu0 %v998
      %1507 = vmatpush.msra.mxu0 %v997
      %1508 = vmatpush.msra.mxu0 %v996
      %1509 = vmatmul.f32.gmra.mxu0 %v879
      %v1510 = vpop.f32.mrf.mxu0
      %v1511 = vadd.f32 %v1482, %v1510
      %1512 = vmatmul.f32.gmra.mxu0 %v888
      %v1513 = vpop.f32.mrf.mxu0
      %v1514 = vadd.f32 %v1485, %v1513
      %1515 = vmatmul.f32.gmra.mxu0 %v897
      %v1516 = vpop.f32.mrf.mxu0
      %v1517 = vadd.f32 %v1488, %v1516
      %1518 = vmatmul.f32.gmra.mxu0 %v906
      %v1519 = vpop.f32.mrf.mxu0
      %v1520 = vadd.f32 %v1491, %v1519
      %1521 = vdwg.mxu0
      %1522 = vmatpush.msra.mxu0 %v1027
      %1523 = vmatpush.msra.mxu0 %v1026
      %1524 = vmatpush.msra.mxu0 %v1025
      %1525 = vmatpush.msra.mxu0 %v1024
      %1526 = vmatpush.msra.mxu0 %v1023
      %1527 = vmatpush.msra.mxu0 %v1022
      %1528 = vmatpush.msra.mxu0 %v1021
      %1529 = vmatpush.msra.mxu0 %v1020
      %1530 = vmatpush.msra.mxu0 %v1019
      %1531 = vmatpush.msra.mxu0 %v1018
      %1532 = vmatpush.msra.mxu0 %v1017
      %1533 = vmatpush.msra.mxu0 %v1016
      %1534 = vmatpush.msra.mxu0 %v1015
      %1535 = vmatpush.msra.mxu0 %v1014
      %1536 = vmatpush.msra.mxu0 %v1013
      %1537 = vmatpush.msra.mxu0 %v1012
      %1538 = vmatmul.f32.gmra.mxu0 %v880
      %v1539 = vpop.f32.mrf.mxu0
      %v1540 = vadd.f32 %v1511, %v1539
      %1541 = vmatmul.f32.gmra.mxu0 %v889
      %v1542 = vpop.f32.mrf.mxu0
      %v1543 = vadd.f32 %v1514, %v1542
      %1544 = vmatmul.f32.gmra.mxu0 %v898
      %v1545 = vpop.f32.mrf.mxu0
      %v1546 = vadd.f32 %v1517, %v1545
      %1547 = vmatmul.f32.gmra.mxu0 %v907
      %v1548 = vpop.f32.mrf.mxu0
      %v1549 = vadd.f32 %v1520, %v1548
      %1550 = vdwg.mxu0
      %1551 = vmatpush.msra.mxu0 %v1043
      %1552 = vmatpush.msra.mxu0 %v1042
      %1553 = vmatpush.msra.mxu0 %v1041
      %1554 = vmatpush.msra.mxu0 %v1040
      %1555 = vmatpush.msra.mxu0 %v1039
      %1556 = vmatpush.msra.mxu0 %v1038
      %1557 = vmatpush.msra.mxu0 %v1037
      %1558 = vmatpush.msra.mxu0 %v1036
      %1559 = vmatpush.msra.mxu0 %v1035
      %1560 = vmatpush.msra.mxu0 %v1034
      %1561 = vmatpush.msra.mxu0 %v1033
      %1562 = vmatpush.msra.mxu0 %v1032
      %1563 = vmatpush.msra.mxu0 %v1031
      %1564 = vmatpush.msra.mxu0 %v1030
      %1565 = vmatpush.msra.mxu0 %v1029
      %1566 = vmatpush.msra.mxu0 %v1028
      %1567 = vmatmul.f32.gmra.mxu0 %v881
      %v1568 = vpop.f32.mrf.mxu0
      %v1569 = vadd.f32 %v1540, %v1568
      %1570 = vmatmul.f32.gmra.mxu0 %v890
      %v1571 = vpop.f32.mrf.mxu0
      %v1572 = vadd.f32 %v1543, %v1571
      %1573 = vmatmul.f32.gmra.mxu0 %v899
      %v1574 = vpop.f32.mrf.mxu0
      %v1575 = vadd.f32 %v1546, %v1574
      %1576 = vmatmul.f32.gmra.mxu0 %v908
      %v1577 = vpop.f32.mrf.mxu0
      %v1578 = vadd.f32 %v1549, %v1577
      %1579 = vdwg.mxu0
      %1580 = vmatpush.msra.mxu0 %v1059
      %1581 = vmatpush.msra.mxu0 %v1058
      %1582 = vmatpush.msra.mxu0 %v1057
      %1583 = vmatpush.msra.mxu0 %v1056
      %1584 = vmatpush.msra.mxu0 %v1055
      %1585 = vmatpush.msra.mxu0 %v1054
      %1586 = vmatpush.msra.mxu0 %v1053
      %1587 = vmatpush.msra.mxu0 %v1052
      %1588 = vmatpush.msra.mxu0 %v1051
      %1589 = vmatpush.msra.mxu0 %v1050
      %1590 = vmatpush.msra.mxu0 %v1049
      %1591 = vmatpush.msra.mxu0 %v1048
      %1592 = vmatpush.msra.mxu0 %v1047
      %1593 = vmatpush.msra.mxu0 %v1046
      %1594 = vmatpush.msra.mxu0 %v1045
      %1595 = vmatpush.msra.mxu0 %v1044
      %1596 = vmatmul.f32.gmra.mxu0 %v882
      %v1597 = vpop.f32.mrf.mxu0
      %v1598 = vadd.f32 %v1569, %v1597
      %1599 = vmatmul.f32.gmra.mxu0 %v891
      %v1600 = vpop.f32.mrf.mxu0
      %v1601 = vadd.f32 %v1572, %v1600
      %1602 = vmatmul.f32.gmra.mxu0 %v900
      %v1603 = vpop.f32.mrf.mxu0
      %v1604 = vadd.f32 %v1575, %v1603
      %1605 = vmatmul.f32.gmra.mxu0 %v909
      %v1606 = vpop.f32.mrf.mxu0
      %v1607 = vadd.f32 %v1578, %v1606
      %1608 = vdwg.mxu0
      %1609 = vmatpush.msra.mxu0 %v1075
      %1610 = vmatpush.msra.mxu0 %v1074
      %1611 = vmatpush.msra.mxu0 %v1073
      %1612 = vmatpush.msra.mxu0 %v1072
      %1613 = vmatpush.msra.mxu0 %v1071
      %1614 = vmatpush.msra.mxu0 %v1070
      %1615 = vmatpush.msra.mxu0 %v1069
      %1616 = vmatpush.msra.mxu0 %v1068
      %1617 = vmatpush.msra.mxu0 %v1067
      %1618 = vmatpush.msra.mxu0 %v1066
      %1619 = vmatpush.msra.mxu0 %v1065
      %1620 = vmatpush.msra.mxu0 %v1064
      %1621 = vmatpush.msra.mxu0 %v1063
      %1622 = vmatpush.msra.mxu0 %v1062
      %1623 = vmatpush.msra.mxu0 %v1061
      %1624 = vmatpush.msra.mxu0 %v1060
      %1625 = vmatmul.f32.gmra.mxu0 %v883
      %v1626 = vpop.f32.mrf.mxu0
      %v1627 = vadd.f32 %v1598, %v1626
      %1628 = vmatmul.f32.gmra.mxu0 %v892
      %v1629 = vpop.f32.mrf.mxu0
      %v1630 = vadd.f32 %v1601, %v1629
      %1631 = vmatmul.f32.gmra.mxu0 %v901
      %v1632 = vpop.f32.mrf.mxu0
      %v1633 = vadd.f32 %v1604, %v1632
      %1634 = vmatmul.f32.gmra.mxu0 %v910
      %v1635 = vpop.f32.mrf.mxu0
      %v1636 = vadd.f32 %v1607, %v1635
      %1637 = vdwg.mxu0
      %1638 = vmatpush.msra.mxu0 %v1091
      %1639 = vmatpush.msra.mxu0 %v1090
      %1640 = vmatpush.msra.mxu0 %v1089
      %1641 = vmatpush.msra.mxu0 %v1088
      %1642 = vmatpush.msra.mxu0 %v1087
      %1643 = vmatpush.msra.mxu0 %v1086
      %1644 = vmatpush.msra.mxu0 %v1085
      %1645 = vmatpush.msra.mxu0 %v1084
      %1646 = vmatpush.msra.mxu0 %v1083
      %1647 = vmatpush.msra.mxu0 %v1082
      %1648 = vmatpush.msra.mxu0 %v1081
      %1649 = vmatpush.msra.mxu0 %v1080
      %1650 = vmatpush.msra.mxu0 %v1079
      %1651 = vmatpush.msra.mxu0 %v1078
      %1652 = vmatpush.msra.mxu0 %v1077
      %1653 = vmatpush.msra.mxu0 %v1076
      %1654 = vmatmul.f32.gmra.mxu0 %v884
      %v1655 = vpop.f32.mrf.mxu0
      %v1656 = vadd.f32 %v1627, %v1655
      %1657 = vmatmul.f32.gmra.mxu0 %v893
      %v1658 = vpop.f32.mrf.mxu0
      %v1659 = vadd.f32 %v1630, %v1658
      %1660 = vmatmul.f32.gmra.mxu0 %v902
      %v1661 = vpop.f32.mrf.mxu0
      %v1662 = vadd.f32 %v1633, %v1661
      %1663 = vmatmul.f32.gmra.mxu0 %v911
      %v1664 = vpop.f32.mrf.mxu0
      %v1665 = vadd.f32 %v1636, %v1664
      %1666 = vdwg.mxu0
      %v1667 = vadd.f32 %v1402, %v1656
      %v1668 = vadd.f32 %v1403, %v1659
      %v1669 = vadd.f32 %v1404, %v1662
      %v1670 = vadd.f32 %v1405, %v1665
      %1671 = vst.msk [vmem:[#allocation3] sm:$0xff] %vm1397, %v1667
      %1672 = vst.msk [vmem:[#allocation3 + $0x8] sm:$0xff] %vm1397, %v1668
      %1673 = vst.msk [vmem:[#allocation3 + $0x10] sm:$0xff] %vm1397, %v1669
      %1674 = vst.msk [vmem:[#allocation3 + $0x18] sm:$0xff] %vm1397, %v1670
      %v1675 = vld [vmem:[#allocation4] sm:$0xff]
      %v1676 = vld [vmem:[#allocation4 + $0x8] sm:$0xff]
      %v1677 = vld [vmem:[#allocation4 + $0x10] sm:$0xff]
      %v1678 = vld [vmem:[#allocation4 + $0x18] sm:$0xff]
      %1679 = vmatpush.msra.mxu0 %v963
      %1680 = vmatpush.msra.mxu0 %v962
      %1681 = vmatpush.msra.mxu0 %v961
      %1682 = vmatpush.msra.mxu0 %v960
      %1683 = vmatpush.msra.mxu0 %v959
      %1684 = vmatpush.msra.mxu0 %v958
      %1685 = vmatpush.msra.mxu0 %v957
      %1686 = vmatpush.msra.mxu0 %v956
      %1687 = vmatpush.msra.mxu0 %v955
      %1688 = vmatpush.msra.mxu0 %v954
      %1689 = vmatpush.msra.mxu0 %v953
      %1690 = vmatpush.msra.mxu0 %v952
      %1691 = vmatpush.msra.mxu0 %v951
      %1692 = vmatpush.msra.mxu0 %v950
      %1693 = vmatpush.msra.mxu0 %v949
      %1694 = vmatpush.msra.mxu0 %v948
      %1695 = vmatmul.f32.gmra.mxu0 %v912
      %v1696 = vpop.f32.mrf.mxu0
      %v1697 = vadd.f32 0.0, %v1696
      %1698 = vmatmul.f32.gmra.mxu0 %v921
      %v1699 = vpop.f32.mrf.mxu0
      %v1700 = vadd.f32 0.0, %v1699
      %1701 = vmatmul.f32.gmra.mxu0 %v930
      %v1702 = vpop.f32.mrf.mxu0
      %v1703 = vadd.f32 0.0, %v1702
      %1704 = vmatmul.f32.gmra.mxu0 %v939
      %v1705 = vpop.f32.mrf.mxu0
      %v1706 = vadd.f32 0.0, %v1705
      %1707 = vdwg.mxu0
      %1708 = vmatpush.msra.mxu0 %v979
      %1709 = vmatpush.msra.mxu0 %v978
      %1710 = vmatpush.msra.mxu0 %v977
      %1711 = vmatpush.msra.mxu0 %v976
      %1712 = vmatpush.msra.mxu0 %v975
      %1713 = vmatpush.msra.mxu0 %v974
      %1714 = vmatpush.msra.mxu0 %v973
      %1715 = vmatpush.msra.mxu0 %v972
      %1716 = vmatpush.msra.mxu0 %v971
      %1717 = vmatpush.msra.mxu0 %v970
      %1718 = vmatpush.msra.mxu0 %v969
      %1719 = vmatpush.msra.mxu0 %v968
      %1720 = vmatpush.msra.mxu0 %v967
      %1721 = vmatpush.msra.mxu0 %v966
      %1722 = vmatpush.msra.mxu0 %v965
      %1723 = vmatpush.msra.mxu0 %v964
      %1724 = vmatmul.f32.gmra.mxu0 %v913
      %v1725 = vpop.f32.mrf.mxu0
      %v1726 = vadd.f32 %v1697, %v1725
      %1727 = vmatmul.f32.gmra.mxu0 %v922
      %v1728 = vpop.f32.mrf.mxu0
      %v1729 = vadd.f32 %v1700, %v1728
      %1730 = vmatmul.f32.gmra.mxu0 %v931
      %v1731 = vpop.f32.mrf.mxu0
      %v1732 = vadd.f32 %v1703, %v1731
      %1733 = vmatmul.f32.gmra.mxu0 %v940
      %v1734 = vpop.f32.mrf.mxu0
      %v1735 = vadd.f32 %v1706, %v1734
      %1736 = vdwg.mxu0
      %1737 = vmatpush.msra.mxu0 %v995
      %1738 = vmatpush.msra.mxu0 %v994
      %1739 = vmatpush.msra.mxu0 %v993
      %1740 = vmatpush.msra.mxu0 %v992
      %1741 = vmatpush.msra.mxu0 %v991
      %1742 = vmatpush.msra.mxu0 %v990
      %1743 = vmatpush.msra.mxu0 %v989
      %1744 = vmatpush.msra.mxu0 %v988
      %1745 = vmatpush.msra.mxu0 %v987
      %1746 = vmatpush.msra.mxu0 %v986
      %1747 = vmatpush.msra.mxu0 %v985
      %1748 = vmatpush.msra.mxu0 %v984
      %1749 = vmatpush.msra.mxu0 %v983
      %1750 = vmatpush.msra.mxu0 %v982
      %1751 = vmatpush.msra.mxu0 %v981
      %1752 = vmatpush.msra.mxu0 %v980
      %1753 = vmatmul.f32.gmra.mxu0 %v914
      %v1754 = vpop.f32.mrf.mxu0
      %v1755 = vadd.f32 %v1726, %v1754
      %1756 = vmatmul.f32.gmra.mxu0 %v923
      %v1757 = vpop.f32.mrf.mxu0
      %v1758 = vadd.f32 %v1729, %v1757
      %1759 = vmatmul.f32.gmra.mxu0 %v932
      %v1760 = vpop.f32.mrf.mxu0
      %v1761 = vadd.f32 %v1732, %v1760
      %1762 = vmatmul.f32.gmra.mxu0 %v941
      %v1763 = vpop.f32.mrf.mxu0
      %v1764 = vadd.f32 %v1735, %v1763
      %1765 = vdwg.mxu0
      %1766 = vmatpush.msra.mxu0 %v1011
      %1767 = vmatpush.msra.mxu0 %v1010
      %1768 = vmatpush.msra.mxu0 %v1009
      %1769 = vmatpush.msra.mxu0 %v1008
      %1770 = vmatpush.msra.mxu0 %v1007
      %1771 = vmatpush.msra.mxu0 %v1006
      %1772 = vmatpush.msra.mxu0 %v1005
      %1773 = vmatpush.msra.mxu0 %v1004
      %1774 = vmatpush.msra.mxu0 %v1003
      %1775 = vmatpush.msra.mxu0 %v1002
      %1776 = vmatpush.msra.mxu0 %v1001
      %1777 = vmatpush.msra.mxu0 %v1000
      %1778 = vmatpush.msra.mxu0 %v999
      %1779 = vmatpush.msra.mxu0 %v998
      %1780 = vmatpush.msra.mxu0 %v997
      %1781 = vmatpush.msra.mxu0 %v996
      %1782 = vmatmul.f32.gmra.mxu0 %v915
      %v1783 = vpop.f32.mrf.mxu0
      %v1784 = vadd.f32 %v1755, %v1783
      %1785 = vmatmul.f32.gmra.mxu0 %v924
      %v1786 = vpop.f32.mrf.mxu0
      %v1787 = vadd.f32 %v1758, %v1786
      %1788 = vmatmul.f32.gmra.mxu0 %v933
      %v1789 = vpop.f32.mrf.mxu0
      %v1790 = vadd.f32 %v1761, %v1789
      %1791 = vmatmul.f32.gmra.mxu0 %v942
      %v1792 = vpop.f32.mrf.mxu0
      %v1793 = vadd.f32 %v1764, %v1792
      %1794 = vdwg.mxu0
      %1795 = vmatpush.msra.mxu0 %v1027
      %1796 = vmatpush.msra.mxu0 %v1026
      %1797 = vmatpush.msra.mxu0 %v1025
      %1798 = vmatpush.msra.mxu0 %v1024
      %1799 = vmatpush.msra.mxu0 %v1023
      %1800 = vmatpush.msra.mxu0 %v1022
      %1801 = vmatpush.msra.mxu0 %v1021
      %1802 = vmatpush.msra.mxu0 %v1020
      %1803 = vmatpush.msra.mxu0 %v1019
      %1804 = vmatpush.msra.mxu0 %v1018
      %1805 = vmatpush.msra.mxu0 %v1017
      %1806 = vmatpush.msra.mxu0 %v1016
      %1807 = vmatpush.msra.mxu0 %v1015
      %1808 = vmatpush.msra.mxu0 %v1014
      %1809 = vmatpush.msra.mxu0 %v1013
      %1810 = vmatpush.msra.mxu0 %v1012
      %1811 = vmatmul.f32.gmra.mxu0 %v916
      %v1812 = vpop.f32.mrf.mxu0
      %v1813 = vadd.f32 %v1784, %v1812
      %1814 = vmatmul.f32.gmra.mxu0 %v925
      %v1815 = vpop.f32.mrf.mxu0
      %v1816 = vadd.f32 %v1787, %v1815
      %1817 = vmatmul.f32.gmra.mxu0 %v934
      %v1818 = vpop.f32.mrf.mxu0
      %v1819 = vadd.f32 %v1790, %v1818
      %1820 = vmatmul.f32.gmra.mxu0 %v943
      %v1821 = vpop.f32.mrf.mxu0
      %v1822 = vadd.f32 %v1793, %v1821
      %1823 = vdwg.mxu0
      %1824 = vmatpush.msra.mxu0 %v1043
      %1825 = vmatpush.msra.mxu0 %v1042
      %1826 = vmatpush.msra.mxu0 %v1041
      %1827 = vmatpush.msra.mxu0 %v1040
      %1828 = vmatpush.msra.mxu0 %v1039
      %1829 = vmatpush.msra.mxu0 %v1038
      %1830 = vmatpush.msra.mxu0 %v1037
      %1831 = vmatpush.msra.mxu0 %v1036
      %1832 = vmatpush.msra.mxu0 %v1035
      %1833 = vmatpush.msra.mxu0 %v1034
      %1834 = vmatpush.msra.mxu0 %v1033
      %1835 = vmatpush.msra.mxu0 %v1032
      %1836 = vmatpush.msra.mxu0 %v1031
      %1837 = vmatpush.msra.mxu0 %v1030
      %1838 = vmatpush.msra.mxu0 %v1029
      %1839 = vmatpush.msra.mxu0 %v1028
      %1840 = vmatmul.f32.gmra.mxu0 %v917
      %v1841 = vpop.f32.mrf.mxu0
      %v1842 = vadd.f32 %v1813, %v1841
      %1843 = vmatmul.f32.gmra.mxu0 %v926
      %v1844 = vpop.f32.mrf.mxu0
      %v1845 = vadd.f32 %v1816, %v1844
      %1846 = vmatmul.f32.gmra.mxu0 %v935
      %v1847 = vpop.f32.mrf.mxu0
      %v1848 = vadd.f32 %v1819, %v1847
      %1849 = vmatmul.f32.gmra.mxu0 %v944
      %v1850 = vpop.f32.mrf.mxu0
      %v1851 = vadd.f32 %v1822, %v1850
      %1852 = vdwg.mxu0
      %1853 = vmatpush.msra.mxu0 %v1059
      %1854 = vmatpush.msra.mxu0 %v1058
      %1855 = vmatpush.msra.mxu0 %v1057
      %1856 = vmatpush.msra.mxu0 %v1056
      %1857 = vmatpush.msra.mxu0 %v1055
      %1858 = vmatpush.msra.mxu0 %v1054
      %1859 = vmatpush.msra.mxu0 %v1053
      %1860 = vmatpush.msra.mxu0 %v1052
      %1861 = vmatpush.msra.mxu0 %v1051
      %1862 = vmatpush.msra.mxu0 %v1050
      %1863 = vmatpush.msra.mxu0 %v1049
      %1864 = vmatpush.msra.mxu0 %v1048
      %1865 = vmatpush.msra.mxu0 %v1047
      %1866 = vmatpush.msra.mxu0 %v1046
      %1867 = vmatpush.msra.mxu0 %v1045
      %1868 = vmatpush.msra.mxu0 %v1044
      %1869 = vmatmul.f32.gmra.mxu0 %v918
      %v1870 = vpop.f32.mrf.mxu0
      %v1871 = vadd.f32 %v1842, %v1870
      %1872 = vmatmul.f32.gmra.mxu0 %v927
      %v1873 = vpop.f32.mrf.mxu0
      %v1874 = vadd.f32 %v1845, %v1873
      %1875 = vmatmul.f32.gmra.mxu0 %v936
      %v1876 = vpop.f32.mrf.mxu0
      %v1877 = vadd.f32 %v1848, %v1876
      %1878 = vmatmul.f32.gmra.mxu0 %v945
      %v1879 = vpop.f32.mrf.mxu0
      %v1880 = vadd.f32 %v1851, %v1879
      %1881 = vdwg.mxu0
      %1882 = vmatpush.msra.mxu0 %v1075
      %1883 = vmatpush.msra.mxu0 %v1074
      %1884 = vmatpush.msra.mxu0 %v1073
      %1885 = vmatpush.msra.mxu0 %v1072
      %1886 = vmatpush.msra.mxu0 %v1071
      %1887 = vmatpush.msra.mxu0 %v1070
      %1888 = vmatpush.msra.mxu0 %v1069
      %1889 = vmatpush.msra.mxu0 %v1068
      %1890 = vmatpush.msra.mxu0 %v1067
      %1891 = vmatpush.msra.mxu0 %v1066
      %1892 = vmatpush.msra.mxu0 %v1065
      %1893 = vmatpush.msra.mxu0 %v1064
      %1894 = vmatpush.msra.mxu0 %v1063
      %1895 = vmatpush.msra.mxu0 %v1062
      %1896 = vmatpush.msra.mxu0 %v1061
      %1897 = vmatpush.msra.mxu0 %v1060
      %1898 = vmatmul.f32.gmra.mxu0 %v919
      %v1899 = vpop.f32.mrf.mxu0
      %v1900 = vadd.f32 %v1871, %v1899
      %1901 = vmatmul.f32.gmra.mxu0 %v928
      %v1902 = vpop.f32.mrf.mxu0
      %v1903 = vadd.f32 %v1874, %v1902
      %1904 = vmatmul.f32.gmra.mxu0 %v937
      %v1905 = vpop.f32.mrf.mxu0
      %v1906 = vadd.f32 %v1877, %v1905
      %1907 = vmatmul.f32.gmra.mxu0 %v946
      %v1908 = vpop.f32.mrf.mxu0
      %v1909 = vadd.f32 %v1880, %v1908
      %1910 = vdwg.mxu0
      %1911 = vmatpush.msra.mxu0 %v1091
      %1912 = vmatpush.msra.mxu0 %v1090
      %1913 = vmatpush.msra.mxu0 %v1089
      %1914 = vmatpush.msra.mxu0 %v1088
      %1915 = vmatpush.msra.mxu0 %v1087
      %1916 = vmatpush.msra.mxu0 %v1086
      %1917 = vmatpush.msra.mxu0 %v1085
      %1918 = vmatpush.msra.mxu0 %v1084
      %1919 = vmatpush.msra.mxu0 %v1083
      %1920 = vmatpush.msra.mxu0 %v1082
      %1921 = vmatpush.msra.mxu0 %v1081
      %1922 = vmatpush.msra.mxu0 %v1080
      %1923 = vmatpush.msra.mxu0 %v1079
      %1924 = vmatpush.msra.mxu0 %v1078
      %1925 = vmatpush.msra.mxu0 %v1077
      %1926 = vmatpush.msra.mxu0 %v1076
      %1927 = vmatmul.f32.gmra.mxu0 %v920
      %v1928 = vpop.f32.mrf.mxu0
      %v1929 = vadd.f32 %v1900, %v1928
      %1930 = vmatmul.f32.gmra.mxu0 %v929
      %v1931 = vpop.f32.mrf.mxu0
      %v1932 = vadd.f32 %v1903, %v1931
      %1933 = vmatmul.f32.gmra.mxu0 %v938
      %v1934 = vpop.f32.mrf.mxu0
      %v1935 = vadd.f32 %v1906, %v1934
      %1936 = vmatmul.f32.gmra.mxu0 %v947
      %v1937 = vpop.f32.mrf.mxu0
      %v1938 = vadd.f32 %v1909, %v1937
      %1939 = vdwg.mxu0
      %v1940 = vadd.f32 %v1675, %v1929
      %v1941 = vadd.f32 %v1676, %v1932
      %v1942 = vadd.f32 %v1677, %v1935
      %v1943 = vadd.f32 %v1678, %v1938
      %1944 = vst.msk [vmem:[#allocation4] sm:$0xff] %vm1397, %v1940
      %1945 = vst.msk [vmem:[#allocation4 + $0x8] sm:$0xff] %vm1397, %v1941
      %1946 = vst.msk [vmem:[#allocation4 + $0x10] sm:$0xff] %vm1397, %v1942
      %1947 = vst.msk [vmem:[#allocation4 + $0x18] sm:$0xff] %vm1397, %v1943
      // Predicated region
      $region41: #{_f1_loss_impl.1} parent=35 // pred_check
        %p1948 = pneg %p247
      $region42: #{_f1_loss_impl.1} parent=35 // pred_check_branch
        %1950 = sbr.rel (%p1948) target = $region44
      $region43: #{_f1_loss_impl.1} parent=35 // pred_region
        %v1951 = vld [vmem:[#allocation2] sm:$0xff]
        %v1952 = vld [vmem:[#allocation2 + $0x8] sm:$0xff]
        %v1953 = vld [vmem:[#allocation2 + $0x10] sm:$0xff]
        %v1954 = vld [vmem:[#allocation2 + $0x18] sm:$0xff]
        %v1955 = vsel %vm1397, %v1951, 0.0
        %v1956 = vsel %vm1397, %v1952, 0.0
        %v1957 = vadd.f32 %v1955, %v1956
        %v1958 = vsel %vm1397, %v1953, 0.0
        %v1959 = vadd.f32 %v1957, %v1958
        %v1960 = vsel %vm1397, %v1954, 0.0
        %v1961 = vadd.f32 %v1959, %v1960
        %v1962 = vrot.slane %v1961, 4
        %v1963 = vadd.f32 %v1961, %v1962
        %v1964 = vrot.slane %v1963, 2
        %v1965 = vadd.f32 %v1963, %v1964
        %v1966 = vrot.slane %v1965, 1
        %v1967 = vadd.f32 %v1965, %v1966
        %vm1968 = vcmask 65536
        %1969 = vst.msk [vmem:[%s246] sm:$0x1] %vm1968, %v1967
        %v1970 = vld [vmem:[#allocation3] sm:$0xff]
        %v1971 = vld [vmem:[#allocation3 + $0x8] sm:$0xff]
        %v1972 = vld [vmem:[#allocation3 + $0x10] sm:$0xff]
        %v1973 = vld [vmem:[#allocation3 + $0x18] sm:$0xff]
        %v1974 = vsel %vm1397, %v1970, 0.0
        %v1975 = vsel %vm1397, %v1971, 0.0
        %v1976 = vadd.f32 %v1974, %v1975
        %v1977 = vsel %vm1397, %v1972, 0.0
        %v1978 = vadd.f32 %v1976, %v1977
        %v1979 = vsel %vm1397, %v1973, 0.0
        %v1980 = vadd.f32 %v1978, %v1979
        %v1981 = vrot.slane %v1980, 4
        %v1982 = vadd.f32 %v1980, %v1981
        %v1983 = vrot.slane %v1982, 2
        %v1984 = vadd.f32 %v1982, %v1983
        %v1985 = vrot.slane %v1984, 1
        %v1986 = vadd.f32 %v1984, %v1985
        %1987 = vst.msk [vmem:[%s246 + $0x1] sm:$0x1] %vm1968, %v1986
        %v1988 = vld [vmem:[#allocation4] sm:$0xff]
        %v1989 = vld [vmem:[#allocation4 + $0x8] sm:$0xff]
        %v1990 = vld [vmem:[#allocation4 + $0x10] sm:$0xff]
        %v1991 = vld [vmem:[#allocation4 + $0x18] sm:$0xff]
        %v1992 = vsel %vm1397, %v1988, 0.0
        %v1993 = vsel %vm1397, %v1989, 0.0
        %v1994 = vadd.f32 %v1992, %v1993
        %v1995 = vsel %vm1397, %v1990, 0.0
        %v1996 = vadd.f32 %v1994, %v1995
        %v1997 = vsel %vm1397, %v1991, 0.0
        %v1998 = vadd.f32 %v1996, %v1997
        %v1999 = vrot.slane %v1998, 4
        %v2000 = vadd.f32 %v1998, %v1999
        %v2001 = vrot.slane %v2000, 2
        %v2002 = vadd.f32 %v2000, %v2001
        %v2003 = vrot.slane %v2002, 1
        %v2004 = vadd.f32 %v2002, %v2003
        %2005 = vst.msk [vmem:[%s246 + $0x2] sm:$0x1] %vm1968, %v2004
      $region44: #{_f1_loss_impl.1} parent=35 // pred_fallthru
        _
      %p2006 = scmp.lt.s32.totalorder %s19, 1
      %s2007 = scalar_select %p2006, %s19, 1
      %s2008 = smul.addr %s2007, 4
      %s2009 = scalar_lea.vmem %s4, %s2008
      // Predicated region
      $region45: #{_f1_loss_impl.1} parent=35 // pred_check
        %p2010 = pneg %p143
      $region46: #{_f1_loss_impl.1} parent=35 // pred_check_branch
        %2012 = sbr.rel (%p2010) target = $region48
      $region47: #{_f1_loss_impl.1} parent=35 // pred_region
        _
      $region48: #{_f1_loss_impl.1} parent=35 // pred_fallthru
        _
    $region36: #{_f1_loss_impl.1} parent=5 // pred_fallthru
      _
    %p2013 = scmp.le.s32.totalorder 2, %s10
    // Predicated region
    $region49: #{_f1_loss_impl.1} parent=5 // pred_check
      %p2014 = pneg %p2013
    $region50: #{_f1_loss_impl.1} parent=5 // pred_check_branch
      %2016 = sbr.rel (%p2014) target = $region52
    $region51: #{_f1_loss_impl.1} parent=5 // pred_region
      %s2017 = ssub.s32 %s10, 2
      // Predicated region
      $region53: #{_f1_loss_impl.1} parent=51 // pred_check
        %p2018 = pneg %p149
      $region54: #{_f1_loss_impl.1} parent=51 // pred_check_branch
        %2020 = sbr.rel (%p2018) target = $region56
      $region55: #{_f1_loss_impl.1} parent=51 // pred_region
        %p2021 = scmp.lt.s32.totalorder %s21, 1
        %s2022 = scalar_select %p2021, %s21, 1
        %s2023 = smul.addr %s2022, 4
        %s2024 = scalar_lea.vmem %s4, %s2023
      $region56: #{_f1_loss_impl.1} parent=51 // pred_fallthru
        _
    $region52: #{_f1_loss_impl.1} parent=5 // pred_fallthru
      _
  $region6: #{_f1_loss_impl.1} parent=0 // loop_footer
    %s14 = sadd.s32 1, %s10
  $region7: #{_f1_loss_impl.1} parent=0 // loop_footer_branch
    %9 = sbr.rel target = $region3
  $region8: #{_f1_loss_impl.1} parent=0 // loop_exit
    _

</llo_original>
